<compile_context>
chip_gen: v7x
topology: tpu7x:2x2x1
jax: 0.10.0
libtpu: 0.0.40
codegen_flags: <defaults>
</compile_context>

<pallas_src>
import jax
import jax.numpy as jnp
from jax.experimental import pallas as pl
from jax.experimental.pallas import tpu as pltpu

N_INPUTS = 4
N_OUT = 2
N_QUBITS = 1
BN_EPS = 1e-5
MAX_TILE_B = 4096  # batch (lane-axis) tile cap; multiple of 128


# ----------------------------------------------------------------------------
# Kernel: one (feature-major) batch tile per grid step.  All tensors are
# feature-major: features on sublanes, batch on lanes.
# ----------------------------------------------------------------------------
def net_kernel(xt_ref, w1_ref, w2_ref, w3_ref, wq_ref, wo_ref,
               b1_ref, b2_ref, b3_ref, bq_ref, bo_ref, out_ref):
    xt = xt_ref[...]                                              # (64, T) bf16

    # fc_in block 1: Linear(64,64) [+BN folded] + ReLU   (Dropout = identity)
    h = jnp.dot(w1_ref[...], xt, preferred_element_type=jnp.float32)
    h = jnp.maximum(h + b1_ref[...], 0.0)                         # (64, T) f32

    # fc_in block 2: Linear(64,32) [+BN folded] + ReLU
    h = jnp.dot(w2_ref[...], h.astype(jnp.bfloat16),
                preferred_element_type=jnp.float32)
    h = jnp.maximum(h + b2_ref[...], 0.0)                         # (32, T)

    # fc_in block 3: Linear(32,4) [+BN folded] + ReLU
    h = jnp.dot(w3_ref[...], h.astype(jnp.bfloat16),
                preferred_element_type=jnp.float32)
    h = jnp.maximum(h + b3_ref[...], 0.0)                         # (4, T)

    # Quantum surrogate + pre_out [+pre_bn folded]:
    #   q = [cos^2(h/2) | sin^2(h/2)];  q @ Wp + bp
    #     == cos^2(h/2) @ (Wp_top - Wp_bot) + const          (sin^2 = 1 - cos^2)
    #     == cos(h) @ wq' + bq'                              (cos^2(x/2) = (1+cos x)/2)
    #   (all folds done on the host in fold_params)
    # TODO(synk): QuantumLayer.apply is not defined in the source module; this is a
    # deterministic 1-qubit RY-encoding surrogate, not the original circuit.
    c = jnp.cos(h)                                                # (4, T), lane-dense EUP
    h = jnp.dot(wq_ref[...], c, preferred_element_type=jnp.float32)
    h = jnp.maximum(h + bq_ref[...], 0.0)                         # (4, T)

    # fc_out: Linear(4,2) + ReLU  (tiny K=4 dot; negligible next to HBM time)
    h = jnp.dot(wo_ref[...], h, preferred_element_type=jnp.float32)
    out_ref[...] = jnp.maximum(h + bo_ref[...], 0.0)              # (2, T) full-width store


# ----------------------------------------------------------------------------
# Host-side parameter construction and folding.
# ----------------------------------------------------------------------------
def _xavier_normal(key, out_f, in_f):
    std = jnp.sqrt(2.0 / (in_f + out_f))
    # PyTorch Linear weight is (out, in); keep raw params as (in, out) for x @ W.
    w = std * jax.random.normal(key, (out_f, in_f), dtype=jnp.float32)
    return w.T


def make_raw_params(key):
    keys = jax.random.split(key, 5)
    p = {
        "w1": _xavier_normal(keys[0], 64, 64), "b1": jnp.full((64,), 1e-4, jnp.float32),
        "w2": _xavier_normal(keys[1], 32, 64), "b2": jnp.full((32,), 1e-4, jnp.float32),
        "w3": _xavier_normal(keys[2], N_INPUTS, 32), "b3": jnp.full((N_INPUTS,), 1e-4, jnp.float32),
        "wp": _xavier_normal(keys[3], N_INPUTS, N_INPUTS * 2 ** N_QUBITS),
        "bp": jnp.full((N_INPUTS,), 1e-4, jnp.float32),
        "wo": _xavier_normal(keys[4], N_OUT, N_INPUTS), "bo": jnp.full((N_OUT,), 1e-4, jnp.float32),
    }
    # Eval-mode BN stats (placeholders — fold real running stats when loading a checkpoint).
    # TODO(synk): replace with trained running_mean/var/gamma/beta from the PyTorch checkpoint.
    for dim, name in ((64, "bn1"), (32, "bn2"), (N_INPUTS, "bn3"), (N_INPUTS, "bnp")):
        p[name] = dict(mean=jnp.zeros((dim,), jnp.float32), var=jnp.ones((dim,), jnp.float32),
                       gamma=jnp.ones((dim,), jnp.float32), beta=jnp.zeros((dim,), jnp.float32))
    return p


def _bn_fold(w, b, bn):
    # w is (in, out); BN acts per output feature.
    scale = bn["gamma"] / jnp.sqrt(bn["var"] + BN_EPS)
    shift = bn["beta"] - bn["mean"] * scale
    return w * scale[None, :], b * scale + shift


def fold_params(p):
    w1f, b1f = _bn_fold(p["w1"], p["b1"], p["bn1"])
    w2f, b2f = _bn_fold(p["w2"], p["b2"], p["bn2"])
    w3f, b3f = _bn_fold(p["w3"], p["b3"], p["bn3"])

    # Quantum fold:
    #   q @ Wp + bp = cos^2(h/2) @ (Wp[:4]-Wp[4:]) + (1s @ Wp[4:] + bp)
    #   cos^2(h/2) = (1 + cos h)/2
    #     => = cos(h) @ (0.5*Wd) + (0.5*colsum(Wd) + 1s @ Wp[4:] + bp)
    wd = p["wp"][:N_INPUTS] - p["wp"][N_INPUTS:]                  # (4, 4)
    bq = jnp.sum(p["wp"][N_INPUTS:], axis=0) + p["bp"] + 0.5 * jnp.sum(wd, axis=0)
    wq = 0.5 * wd
    wqf, bqf = _bn_fold(wq, bq, p["bnp"])                         # fold pre_bn too

    def col(v):  # (F,) -> (F, 1) f32 column (feature-major bias)
        return v.astype(jnp.float32)[:, None]

    # Transpose to feature-major [out, in]; wide weights shipped as bf16 MXU operands.
    return dict(
        w1=w1f.T.astype(jnp.bfloat16),      # (64, 64)
        w2=w2f.T.astype(jnp.bfloat16),      # (32, 64)
        w3=w3f.T.astype(jnp.bfloat16),      # (4, 32)
        wq=wqf.T.astype(jnp.float32),       # (4, 4)   quantum + pre_out + pre_bn folded
        wo=p["wo"].T.astype(jnp.float32),   # (2, 4)
        b1=col(b1f), b2=col(b2f), b3=col(b3f), bq=col(bqf), bo=col(p["bo"]),
    )


# ----------------------------------------------------------------------------
# Wrapper: batch grid along the lane axis, weights resident via constant index_maps.
# ----------------------------------------------------------------------------
def _pick_tile_b(B):
    # Lane-aligned tile (multiple of 128), capped at MAX_TILE_B, and sized so that
    # batches that allow it get >= 2 grid steps (v7x has 2 TensorCores).
    half_blocks = pl.cdiv(pl.cdiv(B, 2), 128)
    return int(min(MAX_TILE_B, max(128, 128 * half_blocks)))


def _const_spec(shape):
    return pl.BlockSpec(shape, lambda i: (0, 0))


@jax.jit
def net_forward(x, params):
    B = x.shape[0]
    tile_b = _pick_tile_b(B)
    grid = (pl.cdiv(B, tile_b),)

    # Single fused XLA pass over x: f32 -> bf16 cast + transpose to feature-major (64, B).
    # (No jnp.pad and no output slice: ragged last block handled by Pallas padded
    #  reads / masked writes; there are no batch reductions inside the kernel.)
    xt = x.astype(jnp.bfloat16).T

    out_t = pl.pallas_call(
        net_kernel,
        out_shape=jax.ShapeDtypeStruct((N_OUT, B), jnp.float32),
        grid=grid,
        in_specs=[
            pl.BlockSpec((64, tile_b), lambda i: (0, i)),   # x^T tile (bf16)
            _const_spec((64, 64)),                          # w1
            _const_spec((32, 64)),                          # w2
            _const_spec((N_INPUTS, 32)),                    # w3
            _const_spec((N_INPUTS, N_INPUTS)),              # wq (quantum+pre_out folded)
            _const_spec((N_OUT, N_INPUTS)),                 # wo
            _const_spec((64, 1)),                           # b1
            _const_spec((32, 1)),                           # b2
            _const_spec((N_INPUTS, 1)),                     # b3
            _const_spec((N_INPUTS, 1)),                     # bq
            _const_spec((N_OUT, 1)),                        # bo
        ],
        out_specs=pl.BlockSpec((N_OUT, tile_b), lambda i: (0, i)),
        compiler_params=pltpu.CompilerParams(
            dimension_semantics=("parallel",),              # 2 TCs on v7x; free elsewhere
        ),
    )(xt, params["w1"], params["w2"], params["w3"], params["wq"], params["wo"],
      params["b1"], params["b2"], params["b3"], params["bq"], params["bo"])

    return out_t.T  # (B, N_OUT), matching the PyTorch module's output layout


# ----------------------------------------------------------------------------
# Pure-JAX f32 reference (unfolded math) to validate folding + bf16 numerics.
# ----------------------------------------------------------------------------
def reference_forward(x, p):
    def bn(h, stats):
        return (h - stats["mean"]) / jnp.sqrt(stats["var"] + BN_EPS) * stats["gamma"] + stats["beta"]

    h = jnp.maximum(bn(x @ p["w1"] + p["b1"], p["bn1"]), 0.0)
    h = jnp.maximum(bn(h @ p["w2"] + p["b2"], p["bn2"]), 0.0)
    h = jnp.maximum(bn(h @ p["w3"] + p["b3"], p["bn3"]), 0.0)
    c, s = jnp.cos(0.5 * h), jnp.sin(0.5 * h)
    q = jnp.concatenate([c * c, s * s], axis=-1)
    h = jnp.maximum(bn(q @ p["wp"] + p["bp"], p["bnp"]), 0.0)
    return jnp.maximum(h @ p["wo"] + p["bo"], 0.0)


if __name__ == "__main__":
    key = jax.random.PRNGKey(0)
    k_x, k_p = jax.random.split(key)

    B = 300  # not a multiple of the tile: exercises the ragged last block + 2 grid steps
    x = jax.random.normal(k_x, (B, 64), dtype=jnp.float32)

    raw = make_raw_params(k_p)
    params = fold_params(raw)

    out = net_forward(x, params)
    jax.block_until_ready(out)

    assert out.shape == (B, N_OUT) and out.dtype == jnp.float32
    ref = reference_forward(x, raw)
    max_err = float(jnp.max(jnp.abs(out - ref)))
    # bf16 MXU operands => slightly looser tolerance than pure f32.
    assert bool(jnp.allclose(out, ref, atol=3e-2, rtol=3e-2)), f"mismatch: max abs err {max_err}"
    print("KERNEL_OK")
</pallas_src>

<mosaic_0001>
module attributes {stable_mosaic.version = 11 : i64} {
  func.func @net_kernel(%arg0: i32, %arg1: memref<64x256xbf16, #tpu.memory_space<vmem>>, %arg2: memref<64x64xbf16, #tpu.memory_space<vmem>>, %arg3: memref<32x64xbf16, #tpu.memory_space<vmem>>, %arg4: memref<4x32xbf16, #tpu.memory_space<vmem>>, %arg5: memref<4x4xf32, #tpu.memory_space<vmem>>, %arg6: memref<2x4xf32, #tpu.memory_space<vmem>>, %arg7: memref<64x1xf32, #tpu.memory_space<vmem>>, %arg8: memref<32x1xf32, #tpu.memory_space<vmem>>, %arg9: memref<4x1xf32, #tpu.memory_space<vmem>>, %arg10: memref<4x1xf32, #tpu.memory_space<vmem>>, %arg11: memref<2x1xf32, #tpu.memory_space<vmem>>, %arg12: memref<2x256xf32, #tpu.memory_space<vmem>>) attributes {dimension_semantics = [#tpu.dimension_semantics<parallel>], iteration_bounds = array<i64: 2>, scalar_prefetch = 0 : i64, scratch_operands = 0 : i64, tpu.core_type = #tpu.core_type<tc>, window_params = [{transform_indices = @transform_0, window_bounds = array<i64: 64, 256>}, {pipeline_mode = #tpu.pipeline_mode<synchronous>, transform_indices = @transform_1, window_bounds = array<i64: 64, 64>}, {pipeline_mode = #tpu.pipeline_mode<synchronous>, transform_indices = @transform_2, window_bounds = array<i64: 32, 64>}, {pipeline_mode = #tpu.pipeline_mode<synchronous>, transform_indices = @transform_3, window_bounds = array<i64: 4, 32>}, {pipeline_mode = #tpu.pipeline_mode<synchronous>, transform_indices = @transform_4, window_bounds = array<i64: 4, 4>}, {pipeline_mode = #tpu.pipeline_mode<synchronous>, transform_indices = @transform_5, window_bounds = array<i64: 2, 4>}, {pipeline_mode = #tpu.pipeline_mode<synchronous>, transform_indices = @transform_6, window_bounds = array<i64: 64, 1>}, {pipeline_mode = #tpu.pipeline_mode<synchronous>, transform_indices = @transform_7, window_bounds = array<i64: 32, 1>}, {pipeline_mode = #tpu.pipeline_mode<synchronous>, transform_indices = @transform_8, window_bounds = array<i64: 4, 1>}, {pipeline_mode = #tpu.pipeline_mode<synchronous>, transform_indices = @transform_9, window_bounds = array<i64: 4, 1>}, {pipeline_mode = #tpu.pipeline_mode<synchronous>, transform_indices = @transform_10, window_bounds = array<i64: 2, 1>}, {transform_indices = @transform_11, window_bounds = array<i64: 2, 256>}]} {
    %c0 = arith.constant 0 : index
    %c0_0 = arith.constant 0 : index
    %0 = vector.load %arg1[%c0, %c0_0] : memref<64x256xbf16, #tpu.memory_space<vmem>>, vector<64x256xbf16>
    %c0_1 = arith.constant 0 : index
    %c0_2 = arith.constant 0 : index
    %1 = vector.load %arg2[%c0_1, %c0_2] : memref<64x64xbf16, #tpu.memory_space<vmem>>, vector<64x64xbf16>
    %cst = arith.constant dense<0.000000e+00> : vector<64x256xf32>
    %2 = tpu.matmul %1, %0, %cst {dimension_numbers = #tpu.dot_dimension_numbers<[1], [0], [0], [1], [0, 0, 1, 1], [], []>} : vector<64x64xbf16>, vector<64x256xbf16>, vector<64x256xf32> -> vector<64x256xf32>
    %c0_3 = arith.constant 0 : index
    %c0_4 = arith.constant 0 : index
    %3 = vector.load %arg7[%c0_3, %c0_4] : memref<64x1xf32, #tpu.memory_space<vmem>>, vector<64x1xf32>
    %4 = vector.broadcast %3 : vector<64x1xf32> to vector<64x256xf32>
    %5 = arith.addf %2, %4 : vector<64x256xf32>
    %cst_5 = arith.constant 0.000000e+00 : f32
    %6 = vector.broadcast %cst_5 : f32 to vector<64x256xf32>
    %7 = arith.maximumf %5, %6 : vector<64x256xf32>
    %c0_6 = arith.constant 0 : index
    %c0_7 = arith.constant 0 : index
    %8 = vector.load %arg3[%c0_6, %c0_7] : memref<32x64xbf16, #tpu.memory_space<vmem>>, vector<32x64xbf16>
    %9 = arith.truncf %7 : vector<64x256xf32> to vector<64x256xbf16>
    %cst_8 = arith.constant dense<0.000000e+00> : vector<32x256xf32>
    %10 = tpu.matmul %8, %9, %cst_8 {dimension_numbers = #tpu.dot_dimension_numbers<[1], [0], [0], [1], [0, 0, 1, 1], [], []>} : vector<32x64xbf16>, vector<64x256xbf16>, vector<32x256xf32> -> vector<32x256xf32>
    %c0_9 = arith.constant 0 : index
    %c0_10 = arith.constant 0 : index
    %11 = vector.load %arg8[%c0_9, %c0_10] : memref<32x1xf32, #tpu.memory_space<vmem>>, vector<32x1xf32>
    %12 = vector.broadcast %11 : vector<32x1xf32> to vector<32x256xf32>
    %13 = arith.addf %10, %12 : vector<32x256xf32>
    %cst_11 = arith.constant 0.000000e+00 : f32
    %14 = vector.broadcast %cst_11 : f32 to vector<32x256xf32>
    %15 = arith.maximumf %13, %14 : vector<32x256xf32>
    %c0_12 = arith.constant 0 : index
    %c0_13 = arith.constant 0 : index
    %16 = vector.load %arg4[%c0_12, %c0_13] : memref<4x32xbf16, #tpu.memory_space<vmem>>, vector<4x32xbf16>
    %17 = arith.truncf %15 : vector<32x256xf32> to vector<32x256xbf16>
    %cst_14 = arith.constant dense<0.000000e+00> : vector<4x256xf32>
    %18 = tpu.matmul %16, %17, %cst_14 {dimension_numbers = #tpu.dot_dimension_numbers<[1], [0], [0], [1], [0, 0, 1, 1], [], []>} : vector<4x32xbf16>, vector<32x256xbf16>, vector<4x256xf32> -> vector<4x256xf32>
    %c0_15 = arith.constant 0 : index
    %c0_16 = arith.constant 0 : index
    %19 = vector.load %arg9[%c0_15, %c0_16] : memref<4x1xf32, #tpu.memory_space<vmem>>, vector<4x1xf32>
    %20 = vector.broadcast %19 : vector<4x1xf32> to vector<4x256xf32>
    %21 = arith.addf %18, %20 : vector<4x256xf32>
    %cst_17 = arith.constant 0.000000e+00 : f32
    %22 = vector.broadcast %cst_17 : f32 to vector<4x256xf32>
    %23 = arith.maximumf %21, %22 : vector<4x256xf32>
    %24 = math.cos %23 : vector<4x256xf32>
    %c0_18 = arith.constant 0 : index
    %c0_19 = arith.constant 0 : index
    %25 = vector.load %arg5[%c0_18, %c0_19] : memref<4x4xf32, #tpu.memory_space<vmem>>, vector<4x4xf32>
    %cst_20 = arith.constant dense<0.000000e+00> : vector<4x256xf32>
    %26 = tpu.matmul %25, %24, %cst_20 {dimension_numbers = #tpu.dot_dimension_numbers<[1], [0], [0], [1], [0, 0, 1, 1], [], []>} : vector<4x4xf32>, vector<4x256xf32>, vector<4x256xf32> -> vector<4x256xf32>
    %c0_21 = arith.constant 0 : index
    %c0_22 = arith.constant 0 : index
    %27 = vector.load %arg10[%c0_21, %c0_22] : memref<4x1xf32, #tpu.memory_space<vmem>>, vector<4x1xf32>
    %28 = vector.broadcast %27 : vector<4x1xf32> to vector<4x256xf32>
    %29 = arith.addf %26, %28 : vector<4x256xf32>
    %cst_23 = arith.constant 0.000000e+00 : f32
    %30 = vector.broadcast %cst_23 : f32 to vector<4x256xf32>
    %31 = arith.maximumf %29, %30 : vector<4x256xf32>
    %c0_24 = arith.constant 0 : index
    %c0_25 = arith.constant 0 : index
    %32 = vector.load %arg6[%c0_24, %c0_25] : memref<2x4xf32, #tpu.memory_space<vmem>>, vector<2x4xf32>
    %cst_26 = arith.constant dense<0.000000e+00> : vector<2x256xf32>
    %33 = tpu.matmul %32, %31, %cst_26 {dimension_numbers = #tpu.dot_dimension_numbers<[1], [0], [0], [1], [0, 0, 1, 1], [], []>} : vector<2x4xf32>, vector<4x256xf32>, vector<2x256xf32> -> vector<2x256xf32>
    %c0_27 = arith.constant 0 : index
    %c0_28 = arith.constant 0 : index
    %34 = vector.load %arg11[%c0_27, %c0_28] : memref<2x1xf32, #tpu.memory_space<vmem>>, vector<2x1xf32>
    %35 = vector.broadcast %34 : vector<2x1xf32> to vector<2x256xf32>
    %36 = arith.addf %33, %35 : vector<2x256xf32>
    %cst_29 = arith.constant 0.000000e+00 : f32
    %37 = vector.broadcast %cst_29 : f32 to vector<2x256xf32>
    %38 = arith.maximumf %36, %37 : vector<2x256xf32>
    %c0_30 = arith.constant 0 : index
    %c0_31 = arith.constant 0 : index
    %39 = vector.load %arg12[%c0_30, %c0_31] : memref<2x256xf32, #tpu.memory_space<vmem>>, vector<2x256xf32>
    tpu.vector_store %arg12[%c0_30, %c0_31], %38 {strides = array<i32>} : memref<2x256xf32, #tpu.memory_space<vmem>>, vector<2x256xf32>,
    return
  }
  func.func @transform_0(%arg0: i32) -> (i32, i32) {
    %c0_i32 = arith.constant 0 : i32
    %c0_i32_0 = arith.constant 0 : i32
    return %c0_i32, %arg0 : i32, i32
  }
  func.func @transform_1(%arg0: i32) -> (i32, i32) {
    %c0_i32 = arith.constant 0 : i32
    %c0_i32_0 = arith.constant 0 : i32
    %c0_i32_1 = arith.constant 0 : i32
    return %c0_i32, %c0_i32_0 : i32, i32
  }
  func.func @transform_2(%arg0: i32) -> (i32, i32) {
    %c0_i32 = arith.constant 0 : i32
    %c0_i32_0 = arith.constant 0 : i32
    %c0_i32_1 = arith.constant 0 : i32
    return %c0_i32, %c0_i32_0 : i32, i32
  }
  func.func @transform_3(%arg0: i32) -> (i32, i32) {
    %c0_i32 = arith.constant 0 : i32
    %c0_i32_0 = arith.constant 0 : i32
    %c0_i32_1 = arith.constant 0 : i32
    return %c0_i32, %c0_i32_0 : i32, i32
  }
  func.func @transform_4(%arg0: i32) -> (i32, i32) {
    %c0_i32 = arith.constant 0 : i32
    %c0_i32_0 = arith.constant 0 : i32
    %c0_i32_1 = arith.constant 0 : i32
    return %c0_i32, %c0_i32_0 : i32, i32
  }
  func.func @transform_5(%arg0: i32) -> (i32, i32) {
    %c0_i32 = arith.constant 0 : i32
    %c0_i32_0 = arith.constant 0 : i32
    %c0_i32_1 = arith.constant 0 : i32
    return %c0_i32, %c0_i32_0 : i32, i32
  }
  func.func @transform_6(%arg0: i32) -> (i32, i32) {
    %c0_i32 = arith.constant 0 : i32
    %c0_i32_0 = arith.constant 0 : i32
    %c0_i32_1 = arith.constant 0 : i32
    return %c0_i32, %c0_i32_0 : i32, i32
  }
  func.func @transform_7(%arg0: i32) -> (i32, i32) {
    %c0_i32 = arith.constant 0 : i32
    %c0_i32_0 = arith.constant 0 : i32
    %c0_i32_1 = arith.constant 0 : i32
    return %c0_i32, %c0_i32_0 : i32, i32
  }
  func.func @transform_8(%arg0: i32) -> (i32, i32) {
    %c0_i32 = arith.constant 0 : i32
    %c0_i32_0 = arith.constant 0 : i32
    %c0_i32_1 = arith.constant 0 : i32
    return %c0_i32, %c0_i32_0 : i32, i32
  }
  func.func @transform_9(%arg0: i32) -> (i32, i32) {
    %c0_i32 = arith.constant 0 : i32
    %c0_i32_0 = arith.constant 0 : i32
    %c0_i32_1 = arith.constant 0 : i32
    return %c0_i32, %c0_i32_0 : i32, i32
  }
  func.func @transform_10(%arg0: i32) -> (i32, i32) {
    %c0_i32 = arith.constant 0 : i32
    %c0_i32_0 = arith.constant 0 : i32
    %c0_i32_1 = arith.constant 0 : i32
    return %c0_i32, %c0_i32_0 : i32, i32
  }
  func.func @transform_11(%arg0: i32) -> (i32, i32) {
    %c0_i32 = arith.constant 0 : i32
    %c0_i32_0 = arith.constant 0 : i32
    return %c0_i32, %arg0 : i32, i32
  }
}

</mosaic_0001>

<llo_original>
// kernel: net_forward.1
$region0: #{net_forward.1}
  #allocation0 [shape = 'u32[]', space=smem, size = 0x4, offset = 0x4, fixed_abs, tag = 'smem constant byte address 0x4 - core index']
  #allocation1 [shape = 'u32[144,128]{1,0:T(1,128)}', space=vmem, size = 0x12000, scoped, tag = 'internal scratch']
  %s0 = inlined_call_operand.vmem [shape: bf16[64,300], index: 0, kind: input, shape index: {}]
  %s1 = inlined_call_operand.vmem [shape: bf16[64,64], index: 1, kind: input, shape index: {}]
  %s2 = inlined_call_operand.vmem [shape: bf16[32,64], index: 2, kind: input, shape index: {}]
  %s3 = inlined_call_operand.vmem [shape: bf16[4,32], index: 3, kind: input, shape index: {}]
  %s4 = inlined_call_operand.vmem [shape: f32[4,4], index: 4, kind: input, shape index: {}]
  %s5 = inlined_call_operand.vmem [shape: f32[2,4], index: 5, kind: input, shape index: {}]
  %s6 = inlined_call_operand.vmem [shape: f32[64,1], index: 6, kind: input, shape index: {}]
  %s7 = inlined_call_operand.vmem [shape: f32[32,1], index: 7, kind: input, shape index: {}]
  %s8 = inlined_call_operand.vmem [shape: f32[4,1], index: 8, kind: input, shape index: {}]
  %s9 = inlined_call_operand.vmem [shape: f32[4,1], index: 9, kind: input, shape index: {}]
  %s10 = inlined_call_operand.vmem [shape: f32[2,1], index: 10, kind: input, shape index: {}]
  %s11 = inlined_call_operand.hbm [shape: f32[2,300], index: 11, kind: output, shape index: {}]
  %s12 = sld [smem:[#allocation0]]
  $region143: #{net_forward.1} parent=0
    _
  %s14 = ssub.s32 1, %s12
  %s15 = scalar_select 0, %s14, %s12
  $region1: #{net_forward.1} parent=0
    #allocation2 [shape = 'u8[65536]{0}', space=vmem, size = 0x10000, scoped, tag = 'input window, operand 0']
    #allocation3 [shape = 'u8[4096]{0}', space=vmem, size = 0x1000, scoped, tag = 'output window, operand 0']
    #allocation4 [shape = 's32[2]{0}', space=sflag, size = 0x8, scoped, tag = 'scoped memory for net_forward.1']
    %16 = vsyncpa [#allocation4], 0
    %s17 = scalar_lea.sflag [#allocation4], 1
    %18 = vsyncpa %s17, 0
    loop: start=0, step=1, limit=4
    $region2: #{net_forward.1} parent=1 // loop_pre_header
      _
    $region3: #{net_forward.1} parent=1 // loop_header
      %s20 = sphi 0, %s24
      %p21 = scmp.ge.s32.totalorder %s20, 4
      %s30 = sphi 0, %s32
      %s33 = sphi 0, %s30
      %s34 = sphi 0, %s33
      %s50 = sphi 0, %s34
      %s54 = sphi 0, %s54
      %s56 = sphi 0, %s54
      %s57 = sphi 0, %s56
      %s71 = sphi 0, %s57
      %s75 = sphi 0, %s75
      %s77 = sphi 0, %s75
      %s78 = sphi 0, %s77
      %s92 = sphi 0, %s78
      %s96 = sphi 0, %s96
      %s98 = sphi 0, %s96
      %s99 = sphi 0, %s98
      %s113 = sphi 0, %s99
      %s117 = sphi 0, %s117
      %s119 = sphi 0, %s117
      %s120 = sphi 0, %s119
      %s134 = sphi 0, %s120
      %s138 = sphi 0, %s138
      %s140 = sphi 0, %s138
      %s141 = sphi 0, %s140
      %s155 = sphi 0, %s141
      %s159 = sphi 0, %s159
      %s161 = sphi 0, %s159
      %s162 = sphi 0, %s161
      %s176 = sphi 0, %s162
      %s180 = sphi 0, %s180
      %s182 = sphi 0, %s180
      %s183 = sphi 0, %s182
      %s197 = sphi 0, %s183
      %s201 = sphi 0, %s201
      %s203 = sphi 0, %s201
      %s204 = sphi 0, %s203
      %s218 = sphi 0, %s204
      %s222 = sphi 0, %s222
      %s224 = sphi 0, %s222
      %s225 = sphi 0, %s224
      %s239 = sphi 0, %s225
      %s243 = sphi 0, %s243
      %s245 = sphi 0, %s243
      %s246 = sphi 0, %s245
      %s260 = sphi 0, %s246
      %s266 = sphi 0, %s268
      %s269 = sphi 0, %s266
      %s270 = sphi 0, %s269
      %s286 = sphi 0, %s270
    $region4: #{net_forward.1} parent=1 // loop_header_branch
      %23 = sbr.rel (%p21) target = $region8
    $region5: #{net_forward.1} parent=1 // loop_body
      %s25 = ssub.s32 %s20, 1
      %s26 = ssub.s32 %s20, 2
      %s27 = sadd.s32 %s20, 1
      %s28 = ssub.s32 %s20, %s27
      %p29 = scmp.eq.s32.totalorder %s28, 0
      %s31 = sadd.s32 %s30, 1
      %s32 = scalar_select %p29, %s30, %s31
      %p35 = pneg %p29
      %p36 = scmp.eq.s32.totalorder %s20, 1
      %p37 = por %p35, %p36
      %p38 = scmp.ne.s32.totalorder %s30, %s33
      %p39 = scmp.eq.s32.totalorder %s20, 0
      %p40 = por %p38, %p39
      %p41 = scmp.ne.s32.totalorder %s30, %s33
      %p42 = scmp.eq.s32.totalorder %s25, 1
      %p43 = por %p41, %p42
      %p44 = scmp.ne.s32.totalorder %s33, %s34
      %p45 = scmp.eq.s32.totalorder %s25, 0
      %p46 = por %p44, %p45
      %p47 = scmp.ne.s32.totalorder %s33, %s34
      %p48 = scmp.eq.s32.totalorder %s26, 1
      %p49 = por %p47, %p48
      %p51 = scmp.ne.s32.totalorder %s34, %s50
      %p52 = scmp.eq.s32.totalorder %s26, 0
      %p53 = por %p51, %p52
      %s55 = sadd.s32 %s54, 1
      %p58 = scmp.eq.s32.totalorder %s20, 1
      %p59 = scmp.ne.s32.totalorder %s54, %s56
      %p60 = scmp.eq.s32.totalorder %s20, 0
      %p61 = por %p59, %p60
      %p62 = scmp.ne.s32.totalorder %s54, %s56
      %p63 = scmp.eq.s32.totalorder %s25, 1
      %p64 = por %p62, %p63
      %p65 = scmp.ne.s32.totalorder %s56, %s57
      %p66 = scmp.eq.s32.totalorder %s25, 0
      %p67 = por %p65, %p66
      %p68 = scmp.ne.s32.totalorder %s56, %s57
      %p69 = scmp.eq.s32.totalorder %s26, 1
      %p70 = por %p68, %p69
      %p72 = scmp.ne.s32.totalorder %s57, %s71
      %p73 = scmp.eq.s32.totalorder %s26, 0
      %p74 = por %p72, %p73
      %s76 = sadd.s32 %s75, 1
      %p79 = scmp.eq.s32.totalorder %s20, 1
      %p80 = scmp.ne.s32.totalorder %s75, %s77
      %p81 = scmp.eq.s32.totalorder %s20, 0
      %p82 = por %p80, %p81
      %p83 = scmp.ne.s32.totalorder %s75, %s77
      %p84 = scmp.eq.s32.totalorder %s25, 1
      %p85 = por %p83, %p84
      %p86 = scmp.ne.s32.totalorder %s77, %s78
      %p87 = scmp.eq.s32.totalorder %s25, 0
      %p88 = por %p86, %p87
      %p89 = scmp.ne.s32.totalorder %s77, %s78
      %p90 = scmp.eq.s32.totalorder %s26, 1
      %p91 = por %p89, %p90
      %p93 = scmp.ne.s32.totalorder %s78, %s92
      %p94 = scmp.eq.s32.totalorder %s26, 0
      %p95 = por %p93, %p94
      %s97 = sadd.s32 %s96, 1
      %p100 = scmp.eq.s32.totalorder %s20, 1
      %p101 = scmp.ne.s32.totalorder %s96, %s98
      %p102 = scmp.eq.s32.totalorder %s20, 0
      %p103 = por %p101, %p102
      %p104 = scmp.ne.s32.totalorder %s96, %s98
      %p105 = scmp.eq.s32.totalorder %s25, 1
      %p106 = por %p104, %p105
      %p107 = scmp.ne.s32.totalorder %s98, %s99
      %p108 = scmp.eq.s32.totalorder %s25, 0
      %p109 = por %p107, %p108
      %p110 = scmp.ne.s32.totalorder %s98, %s99
      %p111 = scmp.eq.s32.totalorder %s26, 1
      %p112 = por %p110, %p111
      %p114 = scmp.ne.s32.totalorder %s99, %s113
      %p115 = scmp.eq.s32.totalorder %s26, 0
      %p116 = por %p114, %p115
      %s118 = sadd.s32 %s117, 1
      %p121 = scmp.eq.s32.totalorder %s20, 1
      %p122 = scmp.ne.s32.totalorder %s117, %s119
      %p123 = scmp.eq.s32.totalorder %s20, 0
      %p124 = por %p122, %p123
      %p125 = scmp.ne.s32.totalorder %s117, %s119
      %p126 = scmp.eq.s32.totalorder %s25, 1
      %p127 = por %p125, %p126
      %p128 = scmp.ne.s32.totalorder %s119, %s120
      %p129 = scmp.eq.s32.totalorder %s25, 0
      %p130 = por %p128, %p129
      %p131 = scmp.ne.s32.totalorder %s119, %s120
      %p132 = scmp.eq.s32.totalorder %s26, 1
      %p133 = por %p131, %p132
      %p135 = scmp.ne.s32.totalorder %s120, %s134
      %p136 = scmp.eq.s32.totalorder %s26, 0
      %p137 = por %p135, %p136
      %s139 = sadd.s32 %s138, 1
      %p142 = scmp.eq.s32.totalorder %s20, 1
      %p143 = scmp.ne.s32.totalorder %s138, %s140
      %p144 = scmp.eq.s32.totalorder %s20, 0
      %p145 = por %p143, %p144
      %p146 = scmp.ne.s32.totalorder %s138, %s140
      %p147 = scmp.eq.s32.totalorder %s25, 1
      %p148 = por %p146, %p147
      %p149 = scmp.ne.s32.totalorder %s140, %s141
      %p150 = scmp.eq.s32.totalorder %s25, 0
      %p151 = por %p149, %p150
      %p152 = scmp.ne.s32.totalorder %s140, %s141
      %p153 = scmp.eq.s32.totalorder %s26, 1
      %p154 = por %p152, %p153
      %p156 = scmp.ne.s32.totalorder %s141, %s155
      %p157 = scmp.eq.s32.totalorder %s26, 0
      %p158 = por %p156, %p157
      %s160 = sadd.s32 %s159, 1
      %p163 = scmp.eq.s32.totalorder %s20, 1
      %p164 = scmp.ne.s32.totalorder %s159, %s161
      %p165 = scmp.eq.s32.totalorder %s20, 0
      %p166 = por %p164, %p165
      %p167 = scmp.ne.s32.totalorder %s159, %s161
      %p168 = scmp.eq.s32.totalorder %s25, 1
      %p169 = por %p167, %p168
      %p170 = scmp.ne.s32.totalorder %s161, %s162
      %p171 = scmp.eq.s32.totalorder %s25, 0
      %p172 = por %p170, %p171
      %p173 = scmp.ne.s32.totalorder %s161, %s162
      %p174 = scmp.eq.s32.totalorder %s26, 1
      %p175 = por %p173, %p174
      %p177 = scmp.ne.s32.totalorder %s162, %s176
      %p178 = scmp.eq.s32.totalorder %s26, 0
      %p179 = por %p177, %p178
      %s181 = sadd.s32 %s180, 1
      %p184 = scmp.eq.s32.totalorder %s20, 1
      %p185 = scmp.ne.s32.totalorder %s180, %s182
      %p186 = scmp.eq.s32.totalorder %s20, 0
      %p187 = por %p185, %p186
      %p188 = scmp.ne.s32.totalorder %s180, %s182
      %p189 = scmp.eq.s32.totalorder %s25, 1
      %p190 = por %p188, %p189
      %p191 = scmp.ne.s32.totalorder %s182, %s183
      %p192 = scmp.eq.s32.totalorder %s25, 0
      %p193 = por %p191, %p192
      %p194 = scmp.ne.s32.totalorder %s182, %s183
      %p195 = scmp.eq.s32.totalorder %s26, 1
      %p196 = por %p194, %p195
      %p198 = scmp.ne.s32.totalorder %s183, %s197
      %p199 = scmp.eq.s32.totalorder %s26, 0
      %p200 = por %p198, %p199
      %s202 = sadd.s32 %s201, 1
      %p205 = scmp.eq.s32.totalorder %s20, 1
      %p206 = scmp.ne.s32.totalorder %s201, %s203
      %p207 = scmp.eq.s32.totalorder %s20, 0
      %p208 = por %p206, %p207
      %p209 = scmp.ne.s32.totalorder %s201, %s203
      %p210 = scmp.eq.s32.totalorder %s25, 1
      %p211 = por %p209, %p210
      %p212 = scmp.ne.s32.totalorder %s203, %s204
      %p213 = scmp.eq.s32.totalorder %s25, 0
      %p214 = por %p212, %p213
      %p215 = scmp.ne.s32.totalorder %s203, %s204
      %p216 = scmp.eq.s32.totalorder %s26, 1
      %p217 = por %p215, %p216
      %p219 = scmp.ne.s32.totalorder %s204, %s218
      %p220 = scmp.eq.s32.totalorder %s26, 0
      %p221 = por %p219, %p220
      %s223 = sadd.s32 %s222, 1
      %p226 = scmp.eq.s32.totalorder %s20, 1
      %p227 = scmp.ne.s32.totalorder %s222, %s224
      %p228 = scmp.eq.s32.totalorder %s20, 0
      %p229 = por %p227, %p228
      %p230 = scmp.ne.s32.totalorder %s222, %s224
      %p231 = scmp.eq.s32.totalorder %s25, 1
      %p232 = por %p230, %p231
      %p233 = scmp.ne.s32.totalorder %s224, %s225
      %p234 = scmp.eq.s32.totalorder %s25, 0
      %p235 = por %p233, %p234
      %p236 = scmp.ne.s32.totalorder %s224, %s225
      %p237 = scmp.eq.s32.totalorder %s26, 1
      %p238 = por %p236, %p237
      %p240 = scmp.ne.s32.totalorder %s225, %s239
      %p241 = scmp.eq.s32.totalorder %s26, 0
      %p242 = por %p240, %p241
      %s244 = sadd.s32 %s243, 1
      %p247 = scmp.eq.s32.totalorder %s20, 1
      %p248 = scmp.ne.s32.totalorder %s243, %s245
      %p249 = scmp.eq.s32.totalorder %s20, 0
      %p250 = por %p248, %p249
      %p251 = scmp.ne.s32.totalorder %s243, %s245
      %p252 = scmp.eq.s32.totalorder %s25, 1
      %p253 = por %p251, %p252
      %p254 = scmp.ne.s32.totalorder %s245, %s246
      %p255 = scmp.eq.s32.totalorder %s25, 0
      %p256 = por %p254, %p255
      %p257 = scmp.ne.s32.totalorder %s245, %s246
      %p258 = scmp.eq.s32.totalorder %s26, 1
      %p259 = por %p257, %p258
      %p261 = scmp.ne.s32.totalorder %s246, %s260
      %p262 = scmp.eq.s32.totalorder %s26, 0
      %p263 = por %p261, %p262
      %s264 = ssub.s32 %s20, %s27
      %p265 = scmp.eq.s32.totalorder %s264, 0
      %s267 = sadd.s32 %s266, 1
      %s268 = scalar_select %p265, %s266, %s267
      %p271 = pneg %p265
      %p272 = scmp.eq.s32.totalorder %s20, 1
      %p273 = por %p271, %p272
      %p274 = scmp.ne.s32.totalorder %s266, %s269
      %p275 = scmp.eq.s32.totalorder %s20, 0
      %p276 = por %p274, %p275
      %p277 = scmp.ne.s32.totalorder %s266, %s269
      %p278 = scmp.eq.s32.totalorder %s25, 1
      %p279 = por %p277, %p278
      %p280 = scmp.ne.s32.totalorder %s269, %s270
      %p281 = scmp.eq.s32.totalorder %s25, 0
      %p282 = por %p280, %p281
      %p283 = scmp.ne.s32.totalorder %s269, %s270
      %p284 = scmp.eq.s32.totalorder %s26, 1
      %p285 = por %p283, %p284
      %p287 = scmp.ne.s32.totalorder %s270, %s286
      %p288 = scmp.eq.s32.totalorder %s26, 0
      %p289 = por %p287, %p288
      %p290 = scmp.le.s32.totalorder 1, %s20
      %p291 = scmp.lt.s32.totalorder %s20, 3
      %p292 = pnand %p290, %p291
      %p293 = pneg %p292
      // Predicated region
      $region9: #{net_forward.1} parent=5 // pred_check
        _
      $region10: #{net_forward.1} parent=5 // pred_check_branch
        %295 = sbr.rel (%p292) target = $region12
      $region11: #{net_forward.1} parent=5 // pred_region
        %s296 = ssub.s32 %s20, 1
        // Predicated region
        $region13: #{net_forward.1} parent=11 // pred_check
          %p297 = pneg %p67
        $region14: #{net_forward.1} parent=11 // pred_check_branch
          %299 = sbr.rel (%p297) target = $region16
        $region15: #{net_forward.1} parent=11 // pred_region
          _
        $region16: #{net_forward.1} parent=11 // pred_fallthru
          _
        // Predicated region
        $region17: #{net_forward.1} parent=11 // pred_check
          %p300 = pneg %p88
        $region18: #{net_forward.1} parent=11 // pred_check_branch
          %302 = sbr.rel (%p300) target = $region20
        $region19: #{net_forward.1} parent=11 // pred_region
          _
        $region20: #{net_forward.1} parent=11 // pred_fallthru
          _
        // Predicated region
        $region21: #{net_forward.1} parent=11 // pred_check
          %p303 = pneg %p109
        $region22: #{net_forward.1} parent=11 // pred_check_branch
          %305 = sbr.rel (%p303) target = $region24
        $region23: #{net_forward.1} parent=11 // pred_region
          _
        $region24: #{net_forward.1} parent=11 // pred_fallthru
          _
        // Predicated region
        $region25: #{net_forward.1} parent=11 // pred_check
          %p306 = pneg %p130
        $region26: #{net_forward.1} parent=11 // pred_check_branch
          %308 = sbr.rel (%p306) target = $region28
        $region27: #{net_forward.1} parent=11 // pred_region
          _
        $region28: #{net_forward.1} parent=11 // pred_fallthru
          _
        // Predicated region
        $region29: #{net_forward.1} parent=11 // pred_check
          %p309 = pneg %p151
        $region30: #{net_forward.1} parent=11 // pred_check_branch
          %311 = sbr.rel (%p309) target = $region32
        $region31: #{net_forward.1} parent=11 // pred_region
          _
        $region32: #{net_forward.1} parent=11 // pred_fallthru
          _
        // Predicated region
        $region33: #{net_forward.1} parent=11 // pred_check
          %p312 = pneg %p172
        $region34: #{net_forward.1} parent=11 // pred_check_branch
          %314 = sbr.rel (%p312) target = $region36
        $region35: #{net_forward.1} parent=11 // pred_region
          _
        $region36: #{net_forward.1} parent=11 // pred_fallthru
          _
        // Predicated region
        $region37: #{net_forward.1} parent=11 // pred_check
          %p315 = pneg %p193
        $region38: #{net_forward.1} parent=11 // pred_check_branch
          %317 = sbr.rel (%p315) target = $region40
        $region39: #{net_forward.1} parent=11 // pred_region
          _
        $region40: #{net_forward.1} parent=11 // pred_fallthru
          _
        // Predicated region
        $region41: #{net_forward.1} parent=11 // pred_check
          %p318 = pneg %p214
        $region42: #{net_forward.1} parent=11 // pred_check_branch
          %320 = sbr.rel (%p318) target = $region44
        $region43: #{net_forward.1} parent=11 // pred_region
          _
        $region44: #{net_forward.1} parent=11 // pred_fallthru
          _
        // Predicated region
        $region45: #{net_forward.1} parent=11 // pred_check
          %p321 = pneg %p235
        $region46: #{net_forward.1} parent=11 // pred_check_branch
          %323 = sbr.rel (%p321) target = $region48
        $region47: #{net_forward.1} parent=11 // pred_region
          _
        $region48: #{net_forward.1} parent=11 // pred_fallthru
          _
        // Predicated region
        $region49: #{net_forward.1} parent=11 // pred_check
          %p324 = pneg %p256
        $region50: #{net_forward.1} parent=11 // pred_check_branch
          %326 = sbr.rel (%p324) target = $region52
        $region51: #{net_forward.1} parent=11 // pred_region
          _
        $region52: #{net_forward.1} parent=11 // pred_fallthru
          _
      $region12: #{net_forward.1} parent=5 // pred_fallthru
        _
      %p327 = scmp.lt.s32.totalorder %s20, 2
      // Predicated region
      $region53: #{net_forward.1} parent=5 // pred_check
        %p328 = pneg %p327
      $region54: #{net_forward.1} parent=5 // pred_check_branch
        %330 = sbr.rel (%p328) target = $region56
      $region55: #{net_forward.1} parent=5 // pred_region
        // Predicated region
        $region57: #{net_forward.1} parent=55 // pred_check
          %p331 = pneg %p40
        $region58: #{net_forward.1} parent=55 // pred_check_branch
          %333 = sbr.rel (%p331) target = $region60
        $region59: #{net_forward.1} parent=55 // pred_region
          %s334 = sand.u32 %s30, 1
          %s335 = sand.u32 %s30, 1
          %s336 = smul.addr %s335, 64
          %s337 = scalar_lea.vmem [#allocation2], %s336
          %s338 = smul.u32 2, %s20
          %s339 = ssub.s32 3, %s338
          %p340 = scmp.lt.s32.totalorder %s339, 2
          %s341 = scalar_select %p340, %s339, 2
          %s342 = smul.u32 512, %s341
          %p343 = scmp.ne.s32.totalorder 0, %s342
          %s344 = smul.addr %s338, 4
          %s345 = scalar_lea.vmem %s0, %s344
          %s346 = smul.u32 %s341, 4
          // Predicated region
          $region61: #{net_forward.1} parent=59 // pred_check
            %p347 = pneg %p343
          $region62: #{net_forward.1} parent=59 // pred_check_branch
            %349 = sbr.rel (%p347) target = $region64
          $region63: #{net_forward.1} parent=59 // pred_region
            %p350 = scmp.lt.u32.totalorder %s346, 8
            %p351 = pneg %p350
            // Predicated region
            $region65: #{net_forward.1} parent=63 // pred_check
              _
            $region66: #{net_forward.1} parent=63 // pred_check_branch
              %353 = sbr.rel (%p350) target = $region68
            $region67: #{net_forward.1} parent=63 // pred_region
              %s382 = sand.u32 %s346, 7
              %p383 = scmp.eq.s32.totalorder %s382, 0
              // Predicated region
              $region80: #{net_forward.1} parent=67 // pred_check
                %p384 = pneg %p383
              $region81: #{net_forward.1} parent=67 // pred_check_branch
                %386 = sbr.rel (%p384) target = $region83
              $region82: #{net_forward.1} parent=67 // pred_region
                %s387 = sshrl.u32 %s346, 3
                %s388 = sshrl.u32 %s387, 3
                // While loop
                $region84: #{net_forward.1} parent=82 // loop_pre_header
                  _
                $region85: #{net_forward.1} parent=82 // loop_header
                  %s392 = sphi 0, %s394
                  %p393 = scmp.ge.s32.totalorder %s392, %s388
                  %s397 = sphi 0, %s530
                  %s398 = sphi %s345, %s533
                  %s399 = sphi %s337, %s534
                $region86: #{net_forward.1} parent=82 // loop_header_branch
                  %396 = sbr.rel (%p393) target = $region90
                $region87: #{net_forward.1} parent=82 // loop_body
                  %v400 = vld [vmem:[%s398] sm:$0xff]
                  %401 = vst [vmem:[%s399] sm:$0xff] %v400
                  %v402 = vld [vmem:[%s398 + $0x8] sm:$0xff]
                  %403 = vst [vmem:[%s399 + $0x8] sm:$0xff] %v402
                  %v404 = vld [vmem:[%s398 + $0x10] sm:$0xff]
                  %405 = vst [vmem:[%s399 + $0x10] sm:$0xff] %v404
                  %v406 = vld [vmem:[%s398 + $0x18] sm:$0xff]
                  %407 = vst [vmem:[%s399 + $0x18] sm:$0xff] %v406
                  %v408 = vld [vmem:[%s398 + $0x20] sm:$0xff]
                  %409 = vst [vmem:[%s399 + $0x20] sm:$0xff] %v408
                  %v410 = vld [vmem:[%s398 + $0x28] sm:$0xff]
                  %411 = vst [vmem:[%s399 + $0x28] sm:$0xff] %v410
                  %v412 = vld [vmem:[%s398 + $0x30] sm:$0xff]
                  %413 = vst [vmem:[%s399 + $0x30] sm:$0xff] %v412
                  %v414 = vld [vmem:[%s398 + $0x38] sm:$0xff]
                  %415 = vst [vmem:[%s399 + $0x38] sm:$0xff] %v414
                  %v416 = vld [vmem:[%s398 + $0xc] sm:$0xff]
                  %417 = vst [vmem:[%s399 + $0x8] sm:$0xff] %v416
                  %v418 = vld [vmem:[%s398 + $0x14] sm:$0xff]
                  %419 = vst [vmem:[%s399 + $0x10] sm:$0xff] %v418
                  %v420 = vld [vmem:[%s398 + $0x1c] sm:$0xff]
                  %421 = vst [vmem:[%s399 + $0x18] sm:$0xff] %v420
                  %v422 = vld [vmem:[%s398 + $0x24] sm:$0xff]
                  %423 = vst [vmem:[%s399 + $0x20] sm:$0xff] %v422
                  %v424 = vld [vmem:[%s398 + $0x2c] sm:$0xff]
                  %425 = vst [vmem:[%s399 + $0x28] sm:$0xff] %v424
                  %v426 = vld [vmem:[%s398 + $0x34] sm:$0xff]
                  %427 = vst [vmem:[%s399 + $0x30] sm:$0xff] %v426
                  %v428 = vld [vmem:[%s398 + $0x3c] sm:$0xff]
                  %429 = vst [vmem:[%s399 + $0x38] sm:$0xff] %v428
                  %v430 = vld [vmem:[%s398 + $0x44] sm:$0xff]
                  %431 = vst [vmem:[%s399 + $0x40] sm:$0xff] %v430
                  %v432 = vld [vmem:[%s398 + $0x18] sm:$0xff]
                  %433 = vst [vmem:[%s399 + $0x10] sm:$0xff] %v432
                  %v434 = vld [vmem:[%s398 + $0x20] sm:$0xff]
                  %435 = vst [vmem:[%s399 + $0x18] sm:$0xff] %v434
                  %v436 = vld [vmem:[%s398 + $0x28] sm:$0xff]
                  %437 = vst [vmem:[%s399 + $0x20] sm:$0xff] %v436
                  %v438 = vld [vmem:[%s398 + $0x30] sm:$0xff]
                  %439 = vst [vmem:[%s399 + $0x28] sm:$0xff] %v438
                  %v440 = vld [vmem:[%s398 + $0x38] sm:$0xff]
                  %441 = vst [vmem:[%s399 + $0x30] sm:$0xff] %v440
                  %v442 = vld [vmem:[%s398 + $0x40] sm:$0xff]
                  %443 = vst [vmem:[%s399 + $0x38] sm:$0xff] %v442
                  %v444 = vld [vmem:[%s398 + $0x48] sm:$0xff]
                  %445 = vst [vmem:[%s399 + $0x40] sm:$0xff] %v444
                  %v446 = vld [vmem:[%s398 + $0x50] sm:$0xff]
                  %447 = vst [vmem:[%s399 + $0x48] sm:$0xff] %v446
                  %v448 = vld [vmem:[%s398 + $0x24] sm:$0xff]
                  %449 = vst [vmem:[%s399 + $0x18] sm:$0xff] %v448
                  %v450 = vld [vmem:[%s398 + $0x2c] sm:$0xff]
                  %451 = vst [vmem:[%s399 + $0x20] sm:$0xff] %v450
                  %v452 = vld [vmem:[%s398 + $0x34] sm:$0xff]
                  %453 = vst [vmem:[%s399 + $0x28] sm:$0xff] %v452
                  %v454 = vld [vmem:[%s398 + $0x3c] sm:$0xff]
                  %455 = vst [vmem:[%s399 + $0x30] sm:$0xff] %v454
                  %v456 = vld [vmem:[%s398 + $0x44] sm:$0xff]
                  %457 = vst [vmem:[%s399 + $0x38] sm:$0xff] %v456
                  %v458 = vld [vmem:[%s398 + $0x4c] sm:$0xff]
                  %459 = vst [vmem:[%s399 + $0x40] sm:$0xff] %v458
                  %v460 = vld [vmem:[%s398 + $0x54] sm:$0xff]
                  %461 = vst [vmem:[%s399 + $0x48] sm:$0xff] %v460
                  %v462 = vld [vmem:[%s398 + $0x5c] sm:$0xff]
                  %463 = vst [vmem:[%s399 + $0x50] sm:$0xff] %v462
                  %v464 = vld [vmem:[%s398 + $0x30] sm:$0xff]
                  %465 = vst [vmem:[%s399 + $0x20] sm:$0xff] %v464
                  %v466 = vld [vmem:[%s398 + $0x38] sm:$0xff]
                  %467 = vst [vmem:[%s399 + $0x28] sm:$0xff] %v466
                  %v468 = vld [vmem:[%s398 + $0x40] sm:$0xff]
                  %469 = vst [vmem:[%s399 + $0x30] sm:$0xff] %v468
                  %v470 = vld [vmem:[%s398 + $0x48] sm:$0xff]
                  %471 = vst [vmem:[%s399 + $0x38] sm:$0xff] %v470
                  %v472 = vld [vmem:[%s398 + $0x50] sm:$0xff]
                  %473 = vst [vmem:[%s399 + $0x40] sm:$0xff] %v472
                  %v474 = vld [vmem:[%s398 + $0x58] sm:$0xff]
                  %475 = vst [vmem:[%s399 + $0x48] sm:$0xff] %v474
                  %v476 = vld [vmem:[%s398 + $0x60] sm:$0xff]
                  %477 = vst [vmem:[%s399 + $0x50] sm:$0xff] %v476
                  %v478 = vld [vmem:[%s398 + $0x68] sm:$0xff]
                  %479 = vst [vmem:[%s399 + $0x58] sm:$0xff] %v478
                  %v480 = vld [vmem:[%s398 + $0x3c] sm:$0xff]
                  %481 = vst [vmem:[%s399 + $0x28] sm:$0xff] %v480
                  %v482 = vld [vmem:[%s398 + $0x44] sm:$0xff]
                  %483 = vst [vmem:[%s399 + $0x30] sm:$0xff] %v482
                  %v484 = vld [vmem:[%s398 + $0x4c] sm:$0xff]
                  %485 = vst [vmem:[%s399 + $0x38] sm:$0xff] %v484
                  %v486 = vld [vmem:[%s398 + $0x54] sm:$0xff]
                  %487 = vst [vmem:[%s399 + $0x40] sm:$0xff] %v486
                  %v488 = vld [vmem:[%s398 + $0x5c] sm:$0xff]
                  %489 = vst [vmem:[%s399 + $0x48] sm:$0xff] %v488
                  %v490 = vld [vmem:[%s398 + $0x64] sm:$0xff]
                  %491 = vst [vmem:[%s399 + $0x50] sm:$0xff] %v490
                  %v492 = vld [vmem:[%s398 + $0x6c] sm:$0xff]
                  %493 = vst [vmem:[%s399 + $0x58] sm:$0xff] %v492
                  %v494 = vld [vmem:[%s398 + $0x74] sm:$0xff]
                  %495 = vst [vmem:[%s399 + $0x60] sm:$0xff] %v494
                  %v496 = vld [vmem:[%s398 + $0x48] sm:$0xff]
                  %497 = vst [vmem:[%s399 + $0x30] sm:$0xff] %v496
                  %v498 = vld [vmem:[%s398 + $0x50] sm:$0xff]
                  %499 = vst [vmem:[%s399 + $0x38] sm:$0xff] %v498
                  %v500 = vld [vmem:[%s398 + $0x58] sm:$0xff]
                  %501 = vst [vmem:[%s399 + $0x40] sm:$0xff] %v500
                  %v502 = vld [vmem:[%s398 + $0x60] sm:$0xff]
                  %503 = vst [vmem:[%s399 + $0x48] sm:$0xff] %v502
                  %v504 = vld [vmem:[%s398 + $0x68] sm:$0xff]
                  %505 = vst [vmem:[%s399 + $0x50] sm:$0xff] %v504
                  %v506 = vld [vmem:[%s398 + $0x70] sm:$0xff]
                  %507 = vst [vmem:[%s399 + $0x58] sm:$0xff] %v506
                  %v508 = vld [vmem:[%s398 + $0x78] sm:$0xff]
                  %509 = vst [vmem:[%s399 + $0x60] sm:$0xff] %v508
                  %v510 = vld [vmem:[%s398 + $0x80] sm:$0xff]
                  %511 = vst [vmem:[%s399 + $0x68] sm:$0xff] %v510
                  %v512 = vld [vmem:[%s398 + $0x54] sm:$0xff]
                  %513 = vst [vmem:[%s399 + $0x38] sm:$0xff] %v512
                  %v514 = vld [vmem:[%s398 + $0x5c] sm:$0xff]
                  %515 = vst [vmem:[%s399 + $0x40] sm:$0xff] %v514
                  %v516 = vld [vmem:[%s398 + $0x64] sm:$0xff]
                  %517 = vst [vmem:[%s399 + $0x48] sm:$0xff] %v516
                  %v518 = vld [vmem:[%s398 + $0x6c] sm:$0xff]
                  %519 = vst [vmem:[%s399 + $0x50] sm:$0xff] %v518
                  %v520 = vld [vmem:[%s398 + $0x74] sm:$0xff]
                  %521 = vst [vmem:[%s399 + $0x58] sm:$0xff] %v520
                  %v522 = vld [vmem:[%s398 + $0x7c] sm:$0xff]
                  %523 = vst [vmem:[%s399 + $0x60] sm:$0xff] %v522
                  %v524 = vld [vmem:[%s398 + $0x84] sm:$0xff]
                  %525 = vst [vmem:[%s399 + $0x68] sm:$0xff] %v524
                  %v526 = vld [vmem:[%s398 + $0x8c] sm:$0xff]
                  %527 = vst [vmem:[%s399 + $0x70] sm:$0xff] %v526
                  %s528 = sadd.s32 1, %s397
                  %p529 = scmp.ge.s32.totalorder %s528, %s388
                  %s530 = scalar_select %p529, 0, %s528
                  %s531 = smul.u32 %s530, 64
                  %s532 = smul.u32 %s530, 64
                  %s533 = scalar_lea.vmem %s345, %s531
                  %s534 = scalar_lea.vmem %s337, %s532 [#allocation2]
                $region88: #{net_forward.1} parent=82 // loop_footer
                  %s394 = sadd.s32 %s392, 1
                $region89: #{net_forward.1} parent=82 // loop_footer_branch
                  %391 = sbr.rel target = $region85
                $region90: #{net_forward.1} parent=82 // loop_exit
                  _
                %s535 = sshrl.u32 %s387, 3
                %s536 = sand.u32 %s387, 7
                %s537 = smul.u32 %s535, 8
                %s538 = smul.u32 128, %s537
                %s539 = sshra.s32 %s538, 4
                %s540 = scalar_lea.vmem %s345, %s539
                %s541 = smul.u32 128, %s537
                %s542 = sshra.s32 %s541, 4
                %s543 = scalar_lea.vmem %s337, %s542 [#allocation2]
                // While loop
                $region91: #{net_forward.1} parent=82 // loop_pre_header
                  _
                $region92: #{net_forward.1} parent=82 // loop_header
                  %s547 = sphi 0, %s549
                  %p548 = scmp.ge.s32.totalorder %s547, %s536
                  %s552 = sphi 0, %s573
                  %s553 = sphi %s540, %s576
                  %s554 = sphi %s543, %s577
                $region93: #{net_forward.1} parent=82 // loop_header_branch
                  %551 = sbr.rel (%p548) target = $region97
                $region94: #{net_forward.1} parent=82 // loop_body
                  %v555 = vld [vmem:[%s553] sm:$0xff]
                  %556 = vst [vmem:[%s554] sm:$0xff] %v555
                  %v557 = vld [vmem:[%s553 + $0xc] sm:$0xff]
                  %558 = vst [vmem:[%s554 + $0x8] sm:$0xff] %v557
                  %v559 = vld [vmem:[%s553 + $0x18] sm:$0xff]
                  %560 = vst [vmem:[%s554 + $0x10] sm:$0xff] %v559
                  %v561 = vld [vmem:[%s553 + $0x24] sm:$0xff]
                  %562 = vst [vmem:[%s554 + $0x18] sm:$0xff] %v561
                  %v563 = vld [vmem:[%s553 + $0x30] sm:$0xff]
                  %564 = vst [vmem:[%s554 + $0x20] sm:$0xff] %v563
                  %v565 = vld [vmem:[%s553 + $0x3c] sm:$0xff]
                  %566 = vst [vmem:[%s554 + $0x28] sm:$0xff] %v565
                  %v567 = vld [vmem:[%s553 + $0x48] sm:$0xff]
                  %568 = vst [vmem:[%s554 + $0x30] sm:$0xff] %v567
                  %v569 = vld [vmem:[%s553 + $0x54] sm:$0xff]
                  %570 = vst [vmem:[%s554 + $0x38] sm:$0xff] %v569
                  %s571 = sadd.s32 1, %s552
                  %p572 = scmp.ge.s32.totalorder %s571, %s536
                  %s573 = scalar_select %p572, 0, %s571
                  %s574 = smul.u32 %s573, 8
                  %s575 = smul.u32 %s573, 8
                  %s576 = scalar_lea.vmem %s540, %s574
                  %s577 = scalar_lea.vmem %s543, %s575 [#allocation2]
                $region95: #{net_forward.1} parent=82 // loop_footer
                  %s549 = sadd.s32 %s547, 1
                $region96: #{net_forward.1} parent=82 // loop_footer_branch
                  %546 = sbr.rel target = $region92
                $region97: #{net_forward.1} parent=82 // loop_exit
                  _
              $region83: #{net_forward.1} parent=67 // pred_fallthru
                _
              %p578 = pneg %p383
              // Predicated region
              $region98: #{net_forward.1} parent=67 // pred_check
                _
              $region99: #{net_forward.1} parent=67 // pred_check_branch
                %580 = sbr.rel (%p383) target = $region101
              $region100: #{net_forward.1} parent=67 // pred_region
                %s581 = sand.u32 %s346, 7
                %s582 = ssub.s32 %s346, %s581
                %s583 = scalar_lea.vmem %s345, %s582
                %s584 = ssub.s32 %s346, %s581
                %s585 = scalar_lea.vmem %s337, %s584 [#allocation2]
                %s586 = sshrl.u32 %s346, 3
                %s587 = sshrl.u32 %s586, 3
                // While loop
                $region102: #{net_forward.1} parent=100 // loop_pre_header
                  _
                $region103: #{net_forward.1} parent=100 // loop_header
                  %s591 = sphi 0, %s593
                  %p592 = scmp.ge.s32.totalorder %s591, %s587
                  %s596 = sphi 0, %s729
                  %s597 = sphi %s345, %s732
                  %s598 = sphi %s337, %s733
                $region104: #{net_forward.1} parent=100 // loop_header_branch
                  %595 = sbr.rel (%p592) target = $region108
                $region105: #{net_forward.1} parent=100 // loop_body
                  %v599 = vld [vmem:[%s597] sm:$0xff]
                  %600 = vst [vmem:[%s598] sm:$0xff] %v599
                  %v601 = vld [vmem:[%s597 + $0x8] sm:$0xff]
                  %602 = vst [vmem:[%s598 + $0x8] sm:$0xff] %v601
                  %v603 = vld [vmem:[%s597 + $0x10] sm:$0xff]
                  %604 = vst [vmem:[%s598 + $0x10] sm:$0xff] %v603
                  %v605 = vld [vmem:[%s597 + $0x18] sm:$0xff]
                  %606 = vst [vmem:[%s598 + $0x18] sm:$0xff] %v605
                  %v607 = vld [vmem:[%s597 + $0x20] sm:$0xff]
                  %608 = vst [vmem:[%s598 + $0x20] sm:$0xff] %v607
                  %v609 = vld [vmem:[%s597 + $0x28] sm:$0xff]
                  %610 = vst [vmem:[%s598 + $0x28] sm:$0xff] %v609
                  %v611 = vld [vmem:[%s597 + $0x30] sm:$0xff]
                  %612 = vst [vmem:[%s598 + $0x30] sm:$0xff] %v611
                  %v613 = vld [vmem:[%s597 + $0x38] sm:$0xff]
                  %614 = vst [vmem:[%s598 + $0x38] sm:$0xff] %v613
                  %v615 = vld [vmem:[%s597 + $0xc] sm:$0xff]
                  %616 = vst [vmem:[%s598 + $0x8] sm:$0xff] %v615
                  %v617 = vld [vmem:[%s597 + $0x14] sm:$0xff]
                  %618 = vst [vmem:[%s598 + $0x10] sm:$0xff] %v617
                  %v619 = vld [vmem:[%s597 + $0x1c] sm:$0xff]
                  %620 = vst [vmem:[%s598 + $0x18] sm:$0xff] %v619
                  %v621 = vld [vmem:[%s597 + $0x24] sm:$0xff]
                  %622 = vst [vmem:[%s598 + $0x20] sm:$0xff] %v621
                  %v623 = vld [vmem:[%s597 + $0x2c] sm:$0xff]
                  %624 = vst [vmem:[%s598 + $0x28] sm:$0xff] %v623
                  %v625 = vld [vmem:[%s597 + $0x34] sm:$0xff]
                  %626 = vst [vmem:[%s598 + $0x30] sm:$0xff] %v625
                  %v627 = vld [vmem:[%s597 + $0x3c] sm:$0xff]
                  %628 = vst [vmem:[%s598 + $0x38] sm:$0xff] %v627
                  %v629 = vld [vmem:[%s597 + $0x44] sm:$0xff]
                  %630 = vst [vmem:[%s598 + $0x40] sm:$0xff] %v629
                  %v631 = vld [vmem:[%s597 + $0x18] sm:$0xff]
                  %632 = vst [vmem:[%s598 + $0x10] sm:$0xff] %v631
                  %v633 = vld [vmem:[%s597 + $0x20] sm:$0xff]
                  %634 = vst [vmem:[%s598 + $0x18] sm:$0xff] %v633
                  %v635 = vld [vmem:[%s597 + $0x28] sm:$0xff]
                  %636 = vst [vmem:[%s598 + $0x20] sm:$0xff] %v635
                  %v637 = vld [vmem:[%s597 + $0x30] sm:$0xff]
                  %638 = vst [vmem:[%s598 + $0x28] sm:$0xff] %v637
                  %v639 = vld [vmem:[%s597 + $0x38] sm:$0xff]
                  %640 = vst [vmem:[%s598 + $0x30] sm:$0xff] %v639
                  %v641 = vld [vmem:[%s597 + $0x40] sm:$0xff]
                  %642 = vst [vmem:[%s598 + $0x38] sm:$0xff] %v641
                  %v643 = vld [vmem:[%s597 + $0x48] sm:$0xff]
                  %644 = vst [vmem:[%s598 + $0x40] sm:$0xff] %v643
                  %v645 = vld [vmem:[%s597 + $0x50] sm:$0xff]
                  %646 = vst [vmem:[%s598 + $0x48] sm:$0xff] %v645
                  %v647 = vld [vmem:[%s597 + $0x24] sm:$0xff]
                  %648 = vst [vmem:[%s598 + $0x18] sm:$0xff] %v647
                  %v649 = vld [vmem:[%s597 + $0x2c] sm:$0xff]
                  %650 = vst [vmem:[%s598 + $0x20] sm:$0xff] %v649
                  %v651 = vld [vmem:[%s597 + $0x34] sm:$0xff]
                  %652 = vst [vmem:[%s598 + $0x28] sm:$0xff] %v651
                  %v653 = vld [vmem:[%s597 + $0x3c] sm:$0xff]
                  %654 = vst [vmem:[%s598 + $0x30] sm:$0xff] %v653
                  %v655 = vld [vmem:[%s597 + $0x44] sm:$0xff]
                  %656 = vst [vmem:[%s598 + $0x38] sm:$0xff] %v655
                  %v657 = vld [vmem:[%s597 + $0x4c] sm:$0xff]
                  %658 = vst [vmem:[%s598 + $0x40] sm:$0xff] %v657
                  %v659 = vld [vmem:[%s597 + $0x54] sm:$0xff]
                  %660 = vst [vmem:[%s598 + $0x48] sm:$0xff] %v659
                  %v661 = vld [vmem:[%s597 + $0x5c] sm:$0xff]
                  %662 = vst [vmem:[%s598 + $0x50] sm:$0xff] %v661
                  %v663 = vld [vmem:[%s597 + $0x30] sm:$0xff]
                  %664 = vst [vmem:[%s598 + $0x20] sm:$0xff] %v663
                  %v665 = vld [vmem:[%s597 + $0x38] sm:$0xff]
                  %666 = vst [vmem:[%s598 + $0x28] sm:$0xff] %v665
                  %v667 = vld [vmem:[%s597 + $0x40] sm:$0xff]
                  %668 = vst [vmem:[%s598 + $0x30] sm:$0xff] %v667
                  %v669 = vld [vmem:[%s597 + $0x48] sm:$0xff]
                  %670 = vst [vmem:[%s598 + $0x38] sm:$0xff] %v669
                  %v671 = vld [vmem:[%s597 + $0x50] sm:$0xff]
                  %672 = vst [vmem:[%s598 + $0x40] sm:$0xff] %v671
                  %v673 = vld [vmem:[%s597 + $0x58] sm:$0xff]
                  %674 = vst [vmem:[%s598 + $0x48] sm:$0xff] %v673
                  %v675 = vld [vmem:[%s597 + $0x60] sm:$0xff]
                  %676 = vst [vmem:[%s598 + $0x50] sm:$0xff] %v675
                  %v677 = vld [vmem:[%s597 + $0x68] sm:$0xff]
                  %678 = vst [vmem:[%s598 + $0x58] sm:$0xff] %v677
                  %v679 = vld [vmem:[%s597 + $0x3c] sm:$0xff]
                  %680 = vst [vmem:[%s598 + $0x28] sm:$0xff] %v679
                  %v681 = vld [vmem:[%s597 + $0x44] sm:$0xff]
                  %682 = vst [vmem:[%s598 + $0x30] sm:$0xff] %v681
                  %v683 = vld [vmem:[%s597 + $0x4c] sm:$0xff]
                  %684 = vst [vmem:[%s598 + $0x38] sm:$0xff] %v683
                  %v685 = vld [vmem:[%s597 + $0x54] sm:$0xff]
                  %686 = vst [vmem:[%s598 + $0x40] sm:$0xff] %v685
                  %v687 = vld [vmem:[%s597 + $0x5c] sm:$0xff]
                  %688 = vst [vmem:[%s598 + $0x48] sm:$0xff] %v687
                  %v689 = vld [vmem:[%s597 + $0x64] sm:$0xff]
                  %690 = vst [vmem:[%s598 + $0x50] sm:$0xff] %v689
                  %v691 = vld [vmem:[%s597 + $0x6c] sm:$0xff]
                  %692 = vst [vmem:[%s598 + $0x58] sm:$0xff] %v691
                  %v693 = vld [vmem:[%s597 + $0x74] sm:$0xff]
                  %694 = vst [vmem:[%s598 + $0x60] sm:$0xff] %v693
                  %v695 = vld [vmem:[%s597 + $0x48] sm:$0xff]
                  %696 = vst [vmem:[%s598 + $0x30] sm:$0xff] %v695
                  %v697 = vld [vmem:[%s597 + $0x50] sm:$0xff]
                  %698 = vst [vmem:[%s598 + $0x38] sm:$0xff] %v697
                  %v699 = vld [vmem:[%s597 + $0x58] sm:$0xff]
                  %700 = vst [vmem:[%s598 + $0x40] sm:$0xff] %v699
                  %v701 = vld [vmem:[%s597 + $0x60] sm:$0xff]
                  %702 = vst [vmem:[%s598 + $0x48] sm:$0xff] %v701
                  %v703 = vld [vmem:[%s597 + $0x68] sm:$0xff]
                  %704 = vst [vmem:[%s598 + $0x50] sm:$0xff] %v703
                  %v705 = vld [vmem:[%s597 + $0x70] sm:$0xff]
                  %706 = vst [vmem:[%s598 + $0x58] sm:$0xff] %v705
                  %v707 = vld [vmem:[%s597 + $0x78] sm:$0xff]
                  %708 = vst [vmem:[%s598 + $0x60] sm:$0xff] %v707
                  %v709 = vld [vmem:[%s597 + $0x80] sm:$0xff]
                  %710 = vst [vmem:[%s598 + $0x68] sm:$0xff] %v709
                  %v711 = vld [vmem:[%s597 + $0x54] sm:$0xff]
                  %712 = vst [vmem:[%s598 + $0x38] sm:$0xff] %v711
                  %v713 = vld [vmem:[%s597 + $0x5c] sm:$0xff]
                  %714 = vst [vmem:[%s598 + $0x40] sm:$0xff] %v713
                  %v715 = vld [vmem:[%s597 + $0x64] sm:$0xff]
                  %716 = vst [vmem:[%s598 + $0x48] sm:$0xff] %v715
                  %v717 = vld [vmem:[%s597 + $0x6c] sm:$0xff]
                  %718 = vst [vmem:[%s598 + $0x50] sm:$0xff] %v717
                  %v719 = vld [vmem:[%s597 + $0x74] sm:$0xff]
                  %720 = vst [vmem:[%s598 + $0x58] sm:$0xff] %v719
                  %v721 = vld [vmem:[%s597 + $0x7c] sm:$0xff]
                  %722 = vst [vmem:[%s598 + $0x60] sm:$0xff] %v721
                  %v723 = vld [vmem:[%s597 + $0x84] sm:$0xff]
                  %724 = vst [vmem:[%s598 + $0x68] sm:$0xff] %v723
                  %v725 = vld [vmem:[%s597 + $0x8c] sm:$0xff]
                  %726 = vst [vmem:[%s598 + $0x70] sm:$0xff] %v725
                  %s727 = sadd.s32 1, %s596
                  %p728 = scmp.ge.s32.totalorder %s727, %s587
                  %s729 = scalar_select %p728, 0, %s727
                  %s730 = smul.u32 %s729, 64
                  %s731 = smul.u32 %s729, 64
                  %s732 = scalar_lea.vmem %s345, %s730
                  %s733 = scalar_lea.vmem %s337, %s731 [#allocation2]
                $region106: #{net_forward.1} parent=100 // loop_footer
                  %s593 = sadd.s32 %s591, 1
                $region107: #{net_forward.1} parent=100 // loop_footer_branch
                  %590 = sbr.rel target = $region103
                $region108: #{net_forward.1} parent=100 // loop_exit
                  _
                %s734 = sshrl.u32 %s586, 3
                %s735 = sand.u32 %s586, 7
                %s736 = smul.u32 %s734, 8
                %s737 = smul.u32 128, %s736
                %s738 = sshra.s32 %s737, 4
                %s739 = scalar_lea.vmem %s345, %s738
                %s740 = smul.u32 128, %s736
                %s741 = sshra.s32 %s740, 4
                %s742 = scalar_lea.vmem %s337, %s741 [#allocation2]
                // While loop
                $region109: #{net_forward.1} parent=100 // loop_pre_header
                  _
                $region110: #{net_forward.1} parent=100 // loop_header
                  %s746 = sphi 0, %s748
                  %p747 = scmp.ge.s32.totalorder %s746, %s735
                  %s751 = sphi 0, %s772
                  %s752 = sphi %s739, %s775
                  %s753 = sphi %s742, %s776
                $region111: #{net_forward.1} parent=100 // loop_header_branch
                  %750 = sbr.rel (%p747) target = $region115
                $region112: #{net_forward.1} parent=100 // loop_body
                  %v754 = vld [vmem:[%s752] sm:$0xff]
                  %755 = vst [vmem:[%s753] sm:$0xff] %v754
                  %v756 = vld [vmem:[%s752 + $0xc] sm:$0xff]
                  %757 = vst [vmem:[%s753 + $0x8] sm:$0xff] %v756
                  %v758 = vld [vmem:[%s752 + $0x18] sm:$0xff]
                  %759 = vst [vmem:[%s753 + $0x10] sm:$0xff] %v758
                  %v760 = vld [vmem:[%s752 + $0x24] sm:$0xff]
                  %761 = vst [vmem:[%s753 + $0x18] sm:$0xff] %v760
                  %v762 = vld [vmem:[%s752 + $0x30] sm:$0xff]
                  %763 = vst [vmem:[%s753 + $0x20] sm:$0xff] %v762
                  %v764 = vld [vmem:[%s752 + $0x3c] sm:$0xff]
                  %765 = vst [vmem:[%s753 + $0x28] sm:$0xff] %v764
                  %v766 = vld [vmem:[%s752 + $0x48] sm:$0xff]
                  %767 = vst [vmem:[%s753 + $0x30] sm:$0xff] %v766
                  %v768 = vld [vmem:[%s752 + $0x54] sm:$0xff]
                  %769 = vst [vmem:[%s753 + $0x38] sm:$0xff] %v768
                  %s770 = sadd.s32 1, %s751
                  %p771 = scmp.ge.s32.totalorder %s770, %s735
                  %s772 = scalar_select %p771, 0, %s770
                  %s773 = smul.u32 %s772, 8
                  %s774 = smul.u32 %s772, 8
                  %s775 = scalar_lea.vmem %s739, %s773
                  %s776 = scalar_lea.vmem %s742, %s774 [#allocation2]
                $region113: #{net_forward.1} parent=100 // loop_footer
                  %s748 = sadd.s32 %s746, 1
                $region114: #{net_forward.1} parent=100 // loop_footer_branch
                  %745 = sbr.rel target = $region110
                $region115: #{net_forward.1} parent=100 // loop_exit
                  _
                %s777 = sshllo.u32 0, %s581
                loop: start=0, step=1, limit=1
                $region116: #{net_forward.1} parent=100 // loop_pre_header
                  _
                $region117: #{net_forward.1} parent=100 // loop_header
                  %s779 = sphi 0, %s783
                  %p780 = scmp.ge.s32.totalorder %s779, 1
                  %s784 = sphi %s583, %s583
                  %s785 = sphi %s585, %s585
                $region118: #{net_forward.1} parent=100 // loop_header_branch
                  %782 = sbr.rel (%p780) target = $region122
                $region119: #{net_forward.1} parent=100 // loop_body
                  %v786 = vld [vmem:[%s784] sm:%s777]
                  %787 = vst [vmem:[%s785] sm:%s777] %v786
                  %v788 = vld [vmem:[%s784 + $0xc] sm:%s777]
                  %789 = vst [vmem:[%s785 + $0x8] sm:%s777] %v788
                  %v790 = vld [vmem:[%s784 + $0x18] sm:%s777]
                  %791 = vst [vmem:[%s785 + $0x10] sm:%s777] %v790
                  %v792 = vld [vmem:[%s784 + $0x24] sm:%s777]
                  %793 = vst [vmem:[%s785 + $0x18] sm:%s777] %v792
                  %v794 = vld [vmem:[%s784 + $0x30] sm:%s777]
                  %795 = vst [vmem:[%s785 + $0x20] sm:%s777] %v794
                  %v796 = vld [vmem:[%s784 + $0x3c] sm:%s777]
                  %797 = vst [vmem:[%s785 + $0x28] sm:%s777] %v796
                  %v798 = vld [vmem:[%s784 + $0x48] sm:%s777]
                  %799 = vst [vmem:[%s785 + $0x30] sm:%s777] %v798
                  %v800 = vld [vmem:[%s784 + $0x54] sm:%s777]
                  %801 = vst [vmem:[%s785 + $0x38] sm:%s777] %v800
                $region120: #{net_forward.1} parent=100 // loop_footer
                  %s783 = sadd.s32 1, %s779
                $region121: #{net_forward.1} parent=100 // loop_footer_branch
                  %778 = sbr.rel target = $region117
                $region122: #{net_forward.1} parent=100 // loop_exit
                  _
              $region101: #{net_forward.1} parent=67 // pred_fallthru
                _
            $region68: #{net_forward.1} parent=63 // pred_fallthru
              _
            // Predicated region
            $region69: #{net_forward.1} parent=63 // pred_check
              %p354 = pneg %p350
            $region70: #{net_forward.1} parent=63 // pred_check_branch
              %356 = sbr.rel (%p354) target = $region72
            $region71: #{net_forward.1} parent=63 // pred_region
              %s357 = sshllo.u32 0, %s346
              loop: start=0, step=1, limit=1
              $region73: #{net_forward.1} parent=71 // loop_pre_header
                _
              $region74: #{net_forward.1} parent=71 // loop_header
                %s359 = sphi 0, %s363
                %p360 = scmp.ge.s32.totalorder %s359, 1
                %s364 = sphi %s345, %s345
                %s365 = sphi %s337, %s337
              $region75: #{net_forward.1} parent=71 // loop_header_branch
                %362 = sbr.rel (%p360) target = $region79
              $region76: #{net_forward.1} parent=71 // loop_body
                %v366 = vld [vmem:[%s364] sm:%s357]
                %367 = vst [vmem:[%s365] sm:%s357] %v366
                %v368 = vld [vmem:[%s364 + $0xc] sm:%s357]
                %369 = vst [vmem:[%s365 + $0x8] sm:%s357] %v368
                %v370 = vld [vmem:[%s364 + $0x18] sm:%s357]
                %371 = vst [vmem:[%s365 + $0x10] sm:%s357] %v370
                %v372 = vld [vmem:[%s364 + $0x24] sm:%s357]
                %373 = vst [vmem:[%s365 + $0x18] sm:%s357] %v372
                %v374 = vld [vmem:[%s364 + $0x30] sm:%s357]
                %375 = vst [vmem:[%s365 + $0x20] sm:%s357] %v374
                %v376 = vld [vmem:[%s364 + $0x3c] sm:%s357]
                %377 = vst [vmem:[%s365 + $0x28] sm:%s357] %v376
                %v378 = vld [vmem:[%s364 + $0x48] sm:%s357]
                %379 = vst [vmem:[%s365 + $0x30] sm:%s357] %v378
                %v380 = vld [vmem:[%s364 + $0x54] sm:%s357]
                %381 = vst [vmem:[%s365 + $0x38] sm:%s357] %v380
              $region77: #{net_forward.1} parent=71 // loop_footer
                %s363 = sadd.s32 1, %s359
              $region78: #{net_forward.1} parent=71 // loop_footer_branch
                %358 = sbr.rel target = $region74
              $region79: #{net_forward.1} parent=71 // loop_exit
                _
            $region72: #{net_forward.1} parent=63 // pred_fallthru
              _
          $region64: #{net_forward.1} parent=59 // pred_fallthru
            _
          %802 = vnop
        $region60: #{net_forward.1} parent=55 // pred_fallthru
          _
      $region56: #{net_forward.1} parent=5 // pred_fallthru
        _
      %p803 = scmp.le.s32.totalorder 1, %s20
      %p804 = scmp.lt.s32.totalorder %s20, 3
      %p805 = pnand %p803, %p804
      %p806 = pneg %p805
      // Predicated region
      $region123: #{net_forward.1} parent=5 // pred_check
        _
      $region124: #{net_forward.1} parent=5 // pred_check_branch
        %808 = sbr.rel (%p805) target = $region126
      $region125: #{net_forward.1} parent=5 // pred_region
        %s809 = ssub.s32 %s20, 1
        %s810 = sand.u32 %s33, 1
        %s811 = sand.u32 %s33, 1
        %s812 = smul.addr %s811, 64
        %s813 = scalar_lea.vmem [#allocation2], %s812
        // Predicated region
        $region127: #{net_forward.1} parent=125 // pred_check
          %p814 = pneg %p46
        $region128: #{net_forward.1} parent=125 // pred_check_branch
          %816 = sbr.rel (%p814) target = $region130
        $region129: #{net_forward.1} parent=125 // pred_region
          _
        $region130: #{net_forward.1} parent=125 // pred_fallthru
          _
        %s817 = sand.u32 %s33, 1
        %s818 = sand.u32 %s33, 1
        %s819 = smul.addr %s818, 64
        %s820 = scalar_lea.vmem [#allocation2], %s819
        %p821 = pneg %p46
        %p822 = pneg %p43
        %p823 = pneg %p67
        %p824 = pneg %p64
        %p825 = pneg %p88
        %p826 = pneg %p85
        %p827 = pneg %p109
        %p828 = pneg %p106
        %p829 = pneg %p130
        %p830 = pneg %p127
        %p831 = pneg %p151
        %p832 = pneg %p148
        %p833 = pneg %p172
        %p834 = pneg %p169
        %p835 = pneg %p193
        %p836 = pneg %p190
        %p837 = pneg %p214
        %p838 = pneg %p211
        %p839 = pneg %p235
        %p840 = pneg %p232
        %p841 = pneg %p256
        %p842 = pneg %p253
        %p843 = pneg %p282
        %p844 = pneg %p279
        %s845 = sand.u32 %s269, 1
        %s846 = scalar_lea.sflag [#allocation4], %s845
        %s847 = sand.u32 %s269, 1
        %s848 = smul.addr %s847, 4
        %s849 = scalar_lea.vmem [#allocation3], %s848
        %s850 = smul.u32 2, %s25
        %s851 = ssub.s32 3, %s850
        %p852 = scmp.lt.s32.totalorder %s851, 2
        %s853 = scalar_select %p852, %s851, 2
        %s854 = smul.u32 512, %s853
        %s855 = smul.u32 2, %s25
        %s856 = ssub.s32 3, %s855
        %p857 = scmp.lt.s32.totalorder %s856, 2
        %s858 = scalar_select %p857, %s856, 2
        %s859 = smul.u32 32, %s858
        %v861 = vld [vmem:[%s813] sm:$0xff]
        %v862 = vld [vmem:[%s813 + $0x8] sm:$0xff]
        %v863 = vld [vmem:[%s813 + $0x10] sm:$0xff]
        %v864 = vld [vmem:[%s813 + $0x18] sm:$0xff]
        %v865 = vld [vmem:[%s813 + $0x20] sm:$0xff]
        %v866 = vld [vmem:[%s813 + $0x28] sm:$0xff]
        %v867 = vld [vmem:[%s813 + $0x30] sm:$0xff]
        %v868 = vld [vmem:[%s813 + $0x38] sm:$0xff]
        %v869 = vld [vmem:[%s1] sm:$0xf]
        %v870 = vld [vmem:[%s1 + $0x4] sm:$0xf]
        %v871 = vld [vmem:[%s1 + $0x8] sm:$0xf]
        %v872 = vld [vmem:[%s1 + $0xc] sm:$0xf]
        %v873 = vld [vmem:[%s1 + $0x10] sm:$0xf]
        %v874 = vld [vmem:[%s1 + $0x14] sm:$0xf]
        %v875 = vld [vmem:[%s1 + $0x18] sm:$0xf]
        %v876 = vld [vmem:[%s1 + $0x1c] sm:$0xf]
        %v877 = vld [vmem:[%s6] sm:$0xff]
        %v878 = vld [vmem:[%s6 + $0x8] sm:$0xff]
        %v879 = vld [vmem:[%s6 + $0x10] sm:$0xff]
        %v880 = vld [vmem:[%s6 + $0x18] sm:$0xff]
        %v881 = vld [vmem:[%s6 + $0x20] sm:$0xff]
        %v882 = vld [vmem:[%s6 + $0x28] sm:$0xff]
        %v883 = vld [vmem:[%s6 + $0x30] sm:$0xff]
        %v884 = vld [vmem:[%s6 + $0x38] sm:$0xff]
        %886 = vset.pattern.permute.xlu0 0
        %887 = vperm.xlu0 %886, %v877
        %v888 = vpop.permute.xlu0 %887
        %891 = vset.pattern.permute.xlu0 0
        %892 = vperm.xlu0 %891, %v878
        %v893 = vpop.permute.xlu0 %892
        %896 = vset.pattern.permute.xlu0 0
        %897 = vperm.xlu0 %896, %v879
        %v898 = vpop.permute.xlu0 %897
        %901 = vset.pattern.permute.xlu0 0
        %902 = vperm.xlu0 %901, %v880
        %v903 = vpop.permute.xlu0 %902
        %906 = vset.pattern.permute.xlu0 0
        %907 = vperm.xlu0 %906, %v881
        %v908 = vpop.permute.xlu0 %907
        %911 = vset.pattern.permute.xlu0 0
        %912 = vperm.xlu0 %911, %v882
        %v913 = vpop.permute.xlu0 %912
        %916 = vset.pattern.permute.xlu0 0
        %917 = vperm.xlu0 %916, %v883
        %v918 = vpop.permute.xlu0 %917
        %921 = vset.pattern.permute.xlu0 0
        %922 = vperm.xlu0 %921, %v884
        %v923 = vpop.permute.xlu0 %922
        %v933 = vunpack.c.l.b16 %v869
        %v934 = vunpack.c.l.b16 %v870
        %v935 = vunpack.c.l.b16 %v871
        %v936 = vunpack.c.l.b16 %v872
        %v937 = vunpack.c.l.b16 %v873
        %v938 = vunpack.c.l.b16 %v874
        %v939 = vunpack.c.l.b16 %v875
        %v940 = vunpack.c.l.b16 %v876
        %v941 = vpack.c.b16 %v934, %v933
        %v942 = vpack.c.b16 %v936, %v935
        %v943 = vpack.c.b16 %v938, %v937
        %v944 = vpack.c.b16 %v940, %v939
        %v953 = vunpack.c.l.b16 %v861
        %v954 = vunpack.c.h.b16 %v861
        %v955 = vunpack.c.l.b16 %v862
        %v956 = vunpack.c.h.b16 %v862
        %v957 = vunpack.c.l.b16 %v863
        %v958 = vunpack.c.h.b16 %v863
        %v959 = vunpack.c.l.b16 %v864
        %v960 = vunpack.c.h.b16 %v864
        %v961 = vunpack.c.l.b16 %v865
        %v962 = vunpack.c.h.b16 %v865
        %v963 = vunpack.c.l.b16 %v866
        %v964 = vunpack.c.h.b16 %v866
        %v965 = vunpack.c.l.b16 %v867
        %v966 = vunpack.c.h.b16 %v867
        %v967 = vunpack.c.l.b16 %v868
        %v968 = vunpack.c.h.b16 %v868
        %v969 = vpack.c.b16 %v955, %v953
        %v970 = vpack.c.b16 %v956, %v954
        %v971 = vpack.c.b16 %v959, %v957
        %v972 = vpack.c.b16 %v960, %v958
        %v973 = vpack.c.b16 %v963, %v961
        %v974 = vpack.c.b16 %v964, %v962
        %v975 = vpack.c.b16 %v967, %v965
        %v976 = vpack.c.b16 %v968, %v966
        %vm985 = vcmask 523264
        %v987 = vsel %vm985, %v941, 0
        %v990 = vsel %vm985, %v942, 0
        %v993 = vsel %vm985, %v943, 0
        %v996 = vsel %vm985, %v944, 0
        %998 = vmatprep.subr.bf16.mxu0 %v970
        %999 = vmatpush1.bf16.msra.mxu0 %v969
        %1000 = vmatprep.subr.bf16.mxu0 %v972
        %1001 = vmatpush1.bf16.msra.mxu0 %v971
        %1002 = vmatprep.subr.bf16.mxu0 %v974
        %1003 = vmatpush1.bf16.msra.mxu0 %v973
        %1004 = vmatprep.subr.bf16.mxu0 %v976
        %1005 = vmatpush1.bf16.msra.mxu0 %v975
        %1006 = vmatprep.subr.bf16.mxu0 0
        %1007 = vmatpush1.bf16.msra.mxu0 0
        %1008 = vmatprep.subr.bf16.mxu0 0
        %1009 = vmatpush1.bf16.msra.mxu0 0
        %1010 = vmatprep.subr.bf16.mxu0 0
        %1011 = vmatpush1.bf16.msra.mxu0 0
        %1012 = vmatprep.subr.bf16.mxu0 0
        %1013 = vmatpush1.bf16.msra.mxu0 0
        %1014 = vmatprep.subr.bf16.mxu0 0
        %1015 = vmatpush1.bf16.msra.mxu0 0
        %1016 = vmatprep.subr.bf16.mxu0 0
        %1017 = vmatpush1.bf16.msra.mxu0 0
        %1018 = vmatprep.subr.bf16.mxu0 0
        %1019 = vmatpush1.bf16.msra.mxu0 0
        %1020 = vmatprep.subr.bf16.mxu0 0
        %1021 = vmatpush1.bf16.msra.mxu0 0
        %1022 = vmatprep.subr.bf16.mxu0 0
        %1023 = vmatpush1.bf16.msra.mxu0 0
        %1024 = vmatprep.subr.bf16.mxu0 0
        %1025 = vmatpush1.bf16.msra.mxu0 0
        %1026 = vmatprep.subr.bf16.mxu0 0
        %1027 = vmatpush1.bf16.msra.mxu0 0
        %1028 = vmatprep.subr.bf16.mxu0 0
        %1029 = vmatpush1.bf16.msra.mxu0 0
        %1030 = vmatprep.mubr.bf16.mxu0 0
        %1031 = vmatmul.mubr.bf16.gmra.mrb[0].mxu0 %v987
        %v1032 = vpop.f32.mrb[0].mxu0
        %v1033 = vadd.f32 %v888, %v1032
        %v1034 = vpop.f32.mrb[0].mxu0
        %v1035 = vadd.f32 %v888, %v1034
        %v1036 = vpop.f32.mrb[0].mxu0
        %v1037 = vadd.f32 %v893, %v1036
        %v1038 = vpop.f32.mrb[0].mxu0
        %v1039 = vadd.f32 %v893, %v1038
        %1040 = vmatprep.mubr.bf16.mxu0 0
        %1041 = vmatmul.mubr.bf16.gmra.mrb[0].mxu0 %v990
        %v1042 = vpop.f32.mrb[0].mxu0
        %v1043 = vadd.f32 %v898, %v1042
        %v1044 = vpop.f32.mrb[0].mxu0
        %v1045 = vadd.f32 %v898, %v1044
        %v1046 = vpop.f32.mrb[0].mxu0
        %v1047 = vadd.f32 %v903, %v1046
        %v1048 = vpop.f32.mrb[0].mxu0
        %v1049 = vadd.f32 %v903, %v1048
        %1050 = vmatprep.mubr.bf16.mxu0 0
        %1051 = vmatmul.mubr.bf16.gmra.mrb[0].mxu0 %v993
        %v1052 = vpop.f32.mrb[0].mxu0
        %v1053 = vadd.f32 %v908, %v1052
        %v1054 = vpop.f32.mrb[0].mxu0
        %v1055 = vadd.f32 %v908, %v1054
        %v1056 = vpop.f32.mrb[0].mxu0
        %v1057 = vadd.f32 %v913, %v1056
        %v1058 = vpop.f32.mrb[0].mxu0
        %v1059 = vadd.f32 %v913, %v1058
        %1060 = vmatprep.mubr.bf16.mxu0 0
        %1061 = vmatmul.mubr.bf16.gmra.mrb[0].mxu0 %v996
        %v1062 = vpop.f32.mrb[0].mxu0
        %v1063 = vadd.f32 %v918, %v1062
        %v1064 = vpop.f32.mrb[0].mxu0
        %v1065 = vadd.f32 %v918, %v1064
        %v1066 = vpop.f32.mrb[0].mxu0
        %v1067 = vadd.f32 %v923, %v1066
        %v1068 = vpop.f32.mrb[0].mxu0
        %v1069 = vadd.f32 %v923, %v1068
        %1070 = vdwg.mxu0
        %v1071 = vmax.f32 %v1033, 0.0
        %v1072 = vmax.f32 %v1035, 0.0
        %v1073 = vmax.f32 %v1037, 0.0
        %v1074 = vmax.f32 %v1039, 0.0
        %v1075 = vmax.f32 %v1043, 0.0
        %v1076 = vmax.f32 %v1045, 0.0
        %v1077 = vmax.f32 %v1047, 0.0
        %v1078 = vmax.f32 %v1049, 0.0
        %v1079 = vmax.f32 %v1053, 0.0
        %v1080 = vmax.f32 %v1055, 0.0
        %v1081 = vmax.f32 %v1057, 0.0
        %v1082 = vmax.f32 %v1059, 0.0
        %v1083 = vmax.f32 %v1063, 0.0
        %v1084 = vmax.f32 %v1065, 0.0
        %v1085 = vmax.f32 %v1067, 0.0
        %v1086 = vmax.f32 %v1069, 0.0
        %v1087 = vld [vmem:[%s2] sm:$0xf]
        %v1088 = vld [vmem:[%s2 + $0x4] sm:$0xf]
        %v1089 = vld [vmem:[%s2 + $0x8] sm:$0xf]
        %v1090 = vld [vmem:[%s2 + $0xc] sm:$0xf]
        %v1091 = vpack.c.bf16 %v1073, %v1071
        %v1092 = vpack.c.bf16 %v1074, %v1072
        %v1093 = vpack.c.bf16 %v1077, %v1075
        %v1094 = vpack.c.bf16 %v1078, %v1076
        %v1095 = vpack.c.bf16 %v1081, %v1079
        %v1096 = vpack.c.bf16 %v1082, %v1080
        %v1097 = vpack.c.bf16 %v1085, %v1083
        %v1098 = vpack.c.bf16 %v1086, %v1084
        %v1099 = vld [vmem:[%s7] sm:$0xff]
        %v1100 = vld [vmem:[%s7 + $0x8] sm:$0xff]
        %v1101 = vld [vmem:[%s7 + $0x10] sm:$0xff]
        %v1102 = vld [vmem:[%s7 + $0x18] sm:$0xff]
        %1104 = vset.pattern.permute.xlu0 0
        %1105 = vperm.xlu0 %1104, %v1099
        %v1106 = vpop.permute.xlu0 %1105
        %1109 = vset.pattern.permute.xlu0 0
        %1110 = vperm.xlu0 %1109, %v1100
        %v1111 = vpop.permute.xlu0 %1110
        %1114 = vset.pattern.permute.xlu0 0
        %1115 = vperm.xlu0 %1114, %v1101
        %v1116 = vpop.permute.xlu0 %1115
        %1119 = vset.pattern.permute.xlu0 0
        %1120 = vperm.xlu0 %1119, %v1102
        %v1121 = vpop.permute.xlu0 %1120
        %v1127 = vunpack.c.l.b16 %v1087
        %v1128 = vunpack.c.l.b16 %v1088
        %v1129 = vunpack.c.l.b16 %v1089
        %v1130 = vunpack.c.l.b16 %v1090
        %v1131 = vpack.c.b16 %v1128, %v1127
        %v1132 = vpack.c.b16 %v1130, %v1129
        %v1134 = vsel %vm985, %v1131, 0
        %v1137 = vsel %vm985, %v1132, 0
        %1139 = vmatprep.subr.bf16.mxu0 %v1092
        %1140 = vmatpush1.bf16.msra.mxu0 %v1091
        %1141 = vmatprep.subr.bf16.mxu0 %v1094
        %1142 = vmatpush1.bf16.msra.mxu0 %v1093
        %1143 = vmatprep.subr.bf16.mxu0 %v1096
        %1144 = vmatpush1.bf16.msra.mxu0 %v1095
        %1145 = vmatprep.subr.bf16.mxu0 %v1098
        %1146 = vmatpush1.bf16.msra.mxu0 %v1097
        %1147 = vmatprep.subr.bf16.mxu0 0
        %1148 = vmatpush1.bf16.msra.mxu0 0
        %1149 = vmatprep.subr.bf16.mxu0 0
        %1150 = vmatpush1.bf16.msra.mxu0 0
        %1151 = vmatprep.subr.bf16.mxu0 0
        %1152 = vmatpush1.bf16.msra.mxu0 0
        %1153 = vmatprep.subr.bf16.mxu0 0
        %1154 = vmatpush1.bf16.msra.mxu0 0
        %1155 = vmatprep.subr.bf16.mxu0 0
        %1156 = vmatpush1.bf16.msra.mxu0 0
        %1157 = vmatprep.subr.bf16.mxu0 0
        %1158 = vmatpush1.bf16.msra.mxu0 0
        %1159 = vmatprep.subr.bf16.mxu0 0
        %1160 = vmatpush1.bf16.msra.mxu0 0
        %1161 = vmatprep.subr.bf16.mxu0 0
        %1162 = vmatpush1.bf16.msra.mxu0 0
        %1163 = vmatprep.subr.bf16.mxu0 0
        %1164 = vmatpush1.bf16.msra.mxu0 0
        %1165 = vmatprep.subr.bf16.mxu0 0
        %1166 = vmatpush1.bf16.msra.mxu0 0
        %1167 = vmatprep.subr.bf16.mxu0 0
        %1168 = vmatpush1.bf16.msra.mxu0 0
        %1169 = vmatprep.subr.bf16.mxu0 0
        %1170 = vmatpush1.bf16.msra.mxu0 0
        %1171 = vmatprep.mubr.bf16.mxu0 0
        %1172 = vmatmul.mubr.bf16.gmra.mrb[0].mxu0 %v1134
        %v1173 = vpop.f32.mrb[0].mxu0
        %v1174 = vadd.f32 %v1106, %v1173
        %v1175 = vpop.f32.mrb[0].mxu0
        %v1176 = vadd.f32 %v1106, %v1175
        %v1177 = vpop.f32.mrb[0].mxu0
        %v1178 = vadd.f32 %v1111, %v1177
        %v1179 = vpop.f32.mrb[0].mxu0
        %v1180 = vadd.f32 %v1111, %v1179
        %1181 = vmatprep.mubr.bf16.mxu0 0
        %1182 = vmatmul.mubr.bf16.gmra.mrb[0].mxu0 %v1137
        %v1183 = vpop.f32.mrb[0].mxu0
        %v1184 = vadd.f32 %v1116, %v1183
        %v1185 = vpop.f32.mrb[0].mxu0
        %v1186 = vadd.f32 %v1116, %v1185
        %v1187 = vpop.f32.mrb[0].mxu0
        %v1188 = vadd.f32 %v1121, %v1187
        %v1189 = vpop.f32.mrb[0].mxu0
        %v1190 = vadd.f32 %v1121, %v1189
        %1191 = vdwg.mxu0
        %v1192 = vmax.f32 %v1174, 0.0
        %v1193 = vmax.f32 %v1176, 0.0
        %v1194 = vmax.f32 %v1178, 0.0
        %v1195 = vmax.f32 %v1180, 0.0
        %v1196 = vmax.f32 %v1184, 0.0
        %v1197 = vmax.f32 %v1186, 0.0
        %v1198 = vmax.f32 %v1188, 0.0
        %v1199 = vmax.f32 %v1190, 0.0
        %v1200 = vld [vmem:[%s3] sm:$0x3]
        %v1201 = vpack.c.bf16 %v1194, %v1192
        %v1202 = vpack.c.bf16 %v1195, %v1193
        %v1203 = vpack.c.bf16 %v1198, %v1196
        %v1204 = vpack.c.bf16 %v1199, %v1197
        %v1205 = vld [vmem:[%s8] sm:$0xf]
        %1207 = vset.pattern.permute.xlu0 0
        %1208 = vperm.xlu0 %1207, %v1205
        %v1209 = vpop.permute.xlu0 %1208
        %vm1211 = vcmask 261120
        %v1213 = vsel %vm1211, %v1200, 0
        %1215 = vmatprep.subr.bf16.mxu0 %v1202
        %1216 = vmatpush1.bf16.msra.mxu0 %v1201
        %1217 = vmatprep.subr.bf16.mxu0 %v1204
        %1218 = vmatpush1.bf16.msra.mxu0 %v1203
        %1219 = vmatprep.subr.bf16.mxu0 0
        %1220 = vmatpush1.bf16.msra.mxu0 0
        %1221 = vmatprep.subr.bf16.mxu0 0
        %1222 = vmatpush1.bf16.msra.mxu0 0
        %1223 = vmatprep.subr.bf16.mxu0 0
        %1224 = vmatpush1.bf16.msra.mxu0 0
        %1225 = vmatprep.subr.bf16.mxu0 0
        %1226 = vmatpush1.bf16.msra.mxu0 0
        %1227 = vmatprep.subr.bf16.mxu0 0
        %1228 = vmatpush1.bf16.msra.mxu0 0
        %1229 = vmatprep.subr.bf16.mxu0 0
        %1230 = vmatpush1.bf16.msra.mxu0 0
        %1231 = vmatprep.subr.bf16.mxu0 0
        %1232 = vmatpush1.bf16.msra.mxu0 0
        %1233 = vmatprep.subr.bf16.mxu0 0
        %1234 = vmatpush1.bf16.msra.mxu0 0
        %1235 = vmatprep.subr.bf16.mxu0 0
        %1236 = vmatpush1.bf16.msra.mxu0 0
        %1237 = vmatprep.subr.bf16.mxu0 0
        %1238 = vmatpush1.bf16.msra.mxu0 0
        %1239 = vmatprep.subr.bf16.mxu0 0
        %1240 = vmatpush1.bf16.msra.mxu0 0
        %1241 = vmatprep.subr.bf16.mxu0 0
        %1242 = vmatpush1.bf16.msra.mxu0 0
        %1243 = vmatprep.subr.bf16.mxu0 0
        %1244 = vmatpush1.bf16.msra.mxu0 0
        %1245 = vmatprep.subr.bf16.mxu0 0
        %1246 = vmatpush1.bf16.msra.mxu0 0
        %1247 = vmatprep.mubr.bf16.mxu0 0
        %1248 = vmatmul.mubr.bf16.gmra.mrb[0].mxu0 %v1213
        %v1249 = vpop.f32.mrb[0].mxu0
        %v1250 = vadd.f32 %v1209, %v1249
        %v1251 = vpop.f32.mrb[0].mxu0
        %v1252 = vadd.f32 %v1209, %v1251
        %v1253 = vpop.f32.mrb[0].mxu0
        %v1254 = vpop.f32.mrb[0].mxu0
        %1255 = vdwg.mxu0
        %v1256 = vmax.f32 %v1250, 0.0
        %v1257 = vmax.f32 %v1252, 0.0
        %v1258 = vand.u32 2147483647, %v1256
        %vm1259 = vcmp.le.f32.partialorder %v1258, 0.7853982
        %vm1260 = vcmp.lt.s32.totalorder %v1256, 0
        %v1261 = vand.u32 %v1256, 2139095040
        %v1262 = vshrl.u32 %v1261, 23
        %v1263 = vsub.s32 %v1262, 127
        %v1264 = vand.u32 2147483647, %v1256
        %v1265 = vand.u32 %v1264, 8388607
        %v1266 = vor.u32 %v1265, 8388608
        %v1267 = vsub.s32 0, %v1266
        %v1268 = vadd.s32 %v1263, 1
        %vm1269 = vcmp.gt.s32.totalorder %v1268, 0
        %v1270 = vsel %vm1269, %v1268, 0
        %v1271 = vshrl.u32 %v1270, 5
        %v1272 = vand.u32 %v1270, 31
        %v1273 = vsub.s32 32, %v1272
        %v1274 = vshrl.u32 683565275, %v1273
        %v1275 = vshll.u32 683565275, %v1272
        %v1276 = vshrl.u32 2475754826, %v1273
        %v1277 = vor.u32 %v1275, %v1276
        %v1278 = vshll.u32 2475754826, %v1272
        %v1279 = vshrl.u32 2131351028, %v1273
        %v1280 = vor.u32 %v1278, %v1279
        %v1281 = vshll.u32 2131351028, %v1272
        %v1282 = vshrl.u32 2102212464, %v1273
        %v1283 = vor.u32 %v1281, %v1282
        %v1284 = vshll.u32 2102212464, %v1272
        %v1285 = vshrl.u32 920167782, %v1273
        %v1286 = vor.u32 %v1284, %v1285
        %v1287 = vshll.u32 920167782, %v1272
        %v1288 = vshrl.u32 1326507024, %v1273
        %v1289 = vor.u32 %v1287, %v1288
        %vm1290 = vcmp.lt.s32.totalorder %v1271, 1
        %vm1291 = vcmp.lt.s32.totalorder %v1271, 2
        %vm1292 = vcmp.lt.s32.totalorder %v1271, 3
        %vm1293 = vcmp.lt.s32.totalorder %v1271, 4
        %v1294 = vsel %vm1290, %v1274, %v1277
        %v1295 = vsel %vm1293, %v1283, 2102212464
        %v1296 = vsel %vm1292, %v1280, %v1295
        %v1297 = vsel %vm1291, %v1294, %v1296
        %v1298 = vsel %vm1290, %v1277, %v1280
        %v1299 = vsel %vm1293, %v1286, 920167782
        %v1300 = vsel %vm1292, %v1283, %v1299
        %v1301 = vsel %vm1291, %v1298, %v1300
        %v1302 = vsel %vm1290, %v1280, %v1283
        %v1303 = vsel %vm1293, %v1289, 1326507024
        %v1304 = vsel %vm1292, %v1286, %v1303
        %v1305 = vsel %vm1291, %v1302, %v1304
        %v1306 = vshll.u32 %v1266, 8
        %v1307 = vmul.u32.u64.compose %v1306, %v1305
        %v1308 = vextract.low.u32 %v1307
        %v1309 = vextract.high.u32 %v1307
        %v1310 = vmul.u32.u64.compose %v1306, %v1301
        %v1311 = vextract.low.u32 %v1310
        %v1312 = vextract.high.u32 %v1310
        %v1313 = vmul.u32 %v1306, %v1297
        %v1314 = vadd.s32 %v1309, %v1311
        %vm1315 = vc.u32 %v1309, %v1311
        %v1316 = vadd.s32 %v1312, 1
        %v1317 = vsel %vm1315, %v1316, %v1312
        %v1318 = vadd.s32 %v1313, %v1317
        %v1319 = vadd.s32 %v1318, 536870912
        %v1320 = vshrl.u32 %v1319, 30
        %v1321 = vshll.u32 %v1320, 30
        %v1322 = vsub.s32 %v1318, %v1321
        %vm1323 = vcmp.lt.s32.totalorder %v1322, 0
        %v1324 = vsub.s32 0, %v1322
        %v1325 = vsel %vm1323, %v1324, %v1322
        %v1326 = vclz %v1325
        %v1327 = vsub.s32 %v1326, 2
        %vm1328 = vcmp.gt.s32.totalorder 0, %v1327
        %v1329 = vsel %vm1328, 0, %v1327
        %v1330 = vsub.s32 32, %v1329
        %v1331 = vshll.u32 %v1322, %v1329
        %v1332 = vshrl.u32 %v1314, %v1330
        %v1333 = vor.u32 %v1331, %v1332
        %v1334 = vsub.s32 4294967266, %v1329
        %v1335 = vadd.s32 %v1334, 127
        %v1336 = vshll.u32 %v1335, 23
        %v1337 = vor.u32 4788187, %v1336
        %v1338 = vand.u32 2147483647, %v1337
        %v1340 = vcvt.s32.f32 %v1333
        %v1341 = vmul.f32 %v1340, %v1338
        %v1342 = vxor.u32 %v1341, 2147483648
        %v1343 = vsel %vm1260, %v1342, %v1341
        %v1344 = vsub.s32 4, %v1320
        %v1345 = vsel %vm1260, %v1344, %v1320
        %v1346 = vsel %vm1259, %v1256, %v1343
        %v1347 = vsel %vm1259, 0, %v1345
        %v1348 = vcosq.f32.pop %v1346
        %v1349 = vsinq.f32.pop %v1346
        %vm1350 = vweird.f32 %v1256
        %v1351 = vand.u32 %v1347, 3
        %vm1352 = vcmp.lt.s32.totalorder %v1351, 2
        %vm1353 = vcmp.eq.s32.totalorder %v1351, 0
        %v1354 = vxor.u32 %v1349, 2147483648
        %v1355 = vsel %vm1353, %v1348, %v1354
        %vm1356 = vcmp.eq.s32.totalorder %v1351, 2
        %v1357 = vxor.u32 %v1348, 2147483648
        %v1358 = vsel %vm1356, %v1357, %v1349
        %v1359 = vsel %vm1352, %v1355, %v1358
        %v1360 = vsel %vm1350, nan, %v1359
        %v1361 = vand.u32 2147483647, %v1257
        %vm1362 = vcmp.le.f32.partialorder %v1361, 0.7853982
        %vm1363 = vcmp.lt.s32.totalorder %v1257, 0
        %v1364 = vand.u32 %v1257, 2139095040
        %v1365 = vshrl.u32 %v1364, 23
        %v1366 = vsub.s32 %v1365, 127
        %v1367 = vand.u32 2147483647, %v1257
        %v1368 = vand.u32 %v1367, 8388607
        %v1369 = vor.u32 %v1368, 8388608
        %v1370 = vsub.s32 0, %v1369
        %v1371 = vadd.s32 %v1366, 1
        %vm1372 = vcmp.gt.s32.totalorder %v1371, 0
        %v1373 = vsel %vm1372, %v1371, 0
        %v1374 = vshrl.u32 %v1373, 5
        %v1375 = vand.u32 %v1373, 31
        %v1376 = vsub.s32 32, %v1375
        %v1377 = vshrl.u32 683565275, %v1376
        %v1378 = vshll.u32 683565275, %v1375
        %v1379 = vshrl.u32 2475754826, %v1376
        %v1380 = vor.u32 %v1378, %v1379
        %v1381 = vshll.u32 2475754826, %v1375
        %v1382 = vshrl.u32 2131351028, %v1376
        %v1383 = vor.u32 %v1381, %v1382
        %v1384 = vshll.u32 2131351028, %v1375
        %v1385 = vshrl.u32 2102212464, %v1376
        %v1386 = vor.u32 %v1384, %v1385
        %v1387 = vshll.u32 2102212464, %v1375
        %v1388 = vshrl.u32 920167782, %v1376
        %v1389 = vor.u32 %v1387, %v1388
        %v1390 = vshll.u32 920167782, %v1375
        %v1391 = vshrl.u32 1326507024, %v1376
        %v1392 = vor.u32 %v1390, %v1391
        %vm1393 = vcmp.lt.s32.totalorder %v1374, 1
        %vm1394 = vcmp.lt.s32.totalorder %v1374, 2
        %vm1395 = vcmp.lt.s32.totalorder %v1374, 3
        %vm1396 = vcmp.lt.s32.totalorder %v1374, 4
        %v1397 = vsel %vm1393, %v1377, %v1380
        %v1398 = vsel %vm1396, %v1386, 2102212464
        %v1399 = vsel %vm1395, %v1383, %v1398
        %v1400 = vsel %vm1394, %v1397, %v1399
        %v1401 = vsel %vm1393, %v1380, %v1383
        %v1402 = vsel %vm1396, %v1389, 920167782
        %v1403 = vsel %vm1395, %v1386, %v1402
        %v1404 = vsel %vm1394, %v1401, %v1403
        %v1405 = vsel %vm1393, %v1383, %v1386
        %v1406 = vsel %vm1396, %v1392, 1326507024
        %v1407 = vsel %vm1395, %v1389, %v1406
        %v1408 = vsel %vm1394, %v1405, %v1407
        %v1409 = vshll.u32 %v1369, 8
        %v1410 = vmul.u32.u64.compose %v1409, %v1408
        %v1411 = vextract.low.u32 %v1410
        %v1412 = vextract.high.u32 %v1410
        %v1413 = vmul.u32.u64.compose %v1409, %v1404
        %v1414 = vextract.low.u32 %v1413
        %v1415 = vextract.high.u32 %v1413
        %v1416 = vmul.u32 %v1409, %v1400
        %v1417 = vadd.s32 %v1412, %v1414
        %vm1418 = vc.u32 %v1412, %v1414
        %v1419 = vadd.s32 %v1415, 1
        %v1420 = vsel %vm1418, %v1419, %v1415
        %v1421 = vadd.s32 %v1416, %v1420
        %v1422 = vadd.s32 %v1421, 536870912
        %v1423 = vshrl.u32 %v1422, 30
        %v1424 = vshll.u32 %v1423, 30
        %v1425 = vsub.s32 %v1421, %v1424
        %vm1426 = vcmp.lt.s32.totalorder %v1425, 0
        %v1427 = vsub.s32 0, %v1425
        %v1428 = vsel %vm1426, %v1427, %v1425
        %v1429 = vclz %v1428
        %v1430 = vsub.s32 %v1429, 2
        %vm1431 = vcmp.gt.s32.totalorder 0, %v1430
        %v1432 = vsel %vm1431, 0, %v1430
        %v1433 = vsub.s32 32, %v1432
        %v1434 = vshll.u32 %v1425, %v1432
        %v1435 = vshrl.u32 %v1417, %v1433
        %v1436 = vor.u32 %v1434, %v1435
        %v1437 = vsub.s32 4294967266, %v1432
        %v1438 = vadd.s32 %v1437, 127
        %v1439 = vshll.u32 %v1438, 23
        %v1440 = vor.u32 4788187, %v1439
        %v1441 = vand.u32 2147483647, %v1440
        %v1443 = vcvt.s32.f32 %v1436
        %v1444 = vmul.f32 %v1443, %v1441
        %v1445 = vxor.u32 %v1444, 2147483648
        %v1446 = vsel %vm1363, %v1445, %v1444
        %v1447 = vsub.s32 4, %v1423
        %v1448 = vsel %vm1363, %v1447, %v1423
        %v1449 = vsel %vm1362, %v1257, %v1446
        %v1450 = vsel %vm1362, 0, %v1448
        %v1451 = vcosq.f32.pop %v1449
        %v1452 = vsinq.f32.pop %v1449
        %vm1453 = vweird.f32 %v1257
        %v1454 = vand.u32 %v1450, 3
        %vm1455 = vcmp.lt.s32.totalorder %v1454, 2
        %vm1456 = vcmp.eq.s32.totalorder %v1454, 0
        %v1457 = vxor.u32 %v1452, 2147483648
        %v1458 = vsel %vm1456, %v1451, %v1457
        %vm1459 = vcmp.eq.s32.totalorder %v1454, 2
        %v1460 = vxor.u32 %v1451, 2147483648
        %v1461 = vsel %vm1459, %v1460, %v1452
        %v1462 = vsel %vm1455, %v1458, %v1461
        %v1463 = vsel %vm1453, nan, %v1462
        %v1464 = vld [vmem:[%s4] sm:$0xf]
        %v1465 = vld [vmem:[%s9] sm:$0xf]
        %1467 = vset.pattern.permute.xlu0 0
        %1468 = vperm.xlu0 %1467, %v1465
        %v1469 = vpop.permute.xlu0 %1468
        %vm1471 = vcmask 31744
        %v1473 = vsel %vm1471, %v1464, 0
        %vm1475 = vcmask 1043456
        %v1477 = vsel %vm1475, %v1360, 0
        %v1480 = vsel %vm1475, %v1463, 0
        %1482 = vmatprep.subr.mxu0 %v1480
        %1483 = vmatpush1.msra.mxu0 %v1477
        %1484 = vmatprep.subr.mxu0 0.0
        %1485 = vmatpush1.msra.mxu0 0.0
        %1486 = vmatprep.subr.mxu0 0.0
        %1487 = vmatpush1.msra.mxu0 0.0
        %1488 = vmatprep.subr.mxu0 0.0
        %1489 = vmatpush1.msra.mxu0 0.0
        %1490 = vmatprep.subr.mxu0 0.0
        %1491 = vmatpush1.msra.mxu0 0.0
        %1492 = vmatprep.subr.mxu0 0.0
        %1493 = vmatpush1.msra.mxu0 0.0
        %1494 = vmatprep.subr.mxu0 0.0
        %1495 = vmatpush1.msra.mxu0 0.0
        %1496 = vmatprep.subr.mxu0 0.0
        %1497 = vmatpush1.msra.mxu0 0.0
        %1498 = vmatprep.subr.mxu0 0.0
        %1499 = vmatpush1.msra.mxu0 0.0
        %1500 = vmatprep.subr.mxu0 0.0
        %1501 = vmatpush1.msra.mxu0 0.0
        %1502 = vmatprep.subr.mxu0 0.0
        %1503 = vmatpush1.msra.mxu0 0.0
        %1504 = vmatprep.subr.mxu0 0.0
        %1505 = vmatpush1.msra.mxu0 0.0
        %1506 = vmatprep.subr.mxu0 0.0
        %1507 = vmatpush1.msra.mxu0 0.0
        %1508 = vmatprep.subr.mxu0 0.0
        %1509 = vmatpush1.msra.mxu0 0.0
        %1510 = vmatprep.subr.mxu0 0.0
        %1511 = vmatpush1.msra.mxu0 0.0
        %1512 = vmatprep.subr.mxu0 0.0
        %1513 = vmatpush1.msra.mxu0 0.0
        %1514 = vmatprep.subr.mxu0 0.0
        %1515 = vmatpush1.msra.mxu0 0.0
        %1516 = vmatprep.subr.mxu0 0.0
        %1517 = vmatpush1.msra.mxu0 0.0
        %1518 = vmatprep.subr.mxu0 0.0
        %1519 = vmatpush1.msra.mxu0 0.0
        %1520 = vmatprep.subr.mxu0 0.0
        %1521 = vmatpush1.msra.mxu0 0.0
        %1522 = vmatprep.subr.mxu0 0.0
        %1523 = vmatpush1.msra.mxu0 0.0
        %1524 = vmatprep.subr.mxu0 0.0
        %1525 = vmatpush1.msra.mxu0 0.0
        %1526 = vmatprep.subr.mxu0 0.0
        %1527 = vmatpush1.msra.mxu0 0.0
        %1528 = vmatprep.subr.mxu0 0.0
        %1529 = vmatpush1.msra.mxu0 0.0
        %1530 = vmatprep.subr.mxu0 0.0
        %1531 = vmatpush1.msra.mxu0 0.0
        %1532 = vmatprep.subr.mxu0 0.0
        %1533 = vmatpush1.msra.mxu0 0.0
        %1534 = vmatprep.subr.mxu0 0.0
        %1535 = vmatpush1.msra.mxu0 0.0
        %1536 = vmatprep.subr.mxu0 0.0
        %1537 = vmatpush1.msra.mxu0 0.0
        %1538 = vmatprep.subr.mxu0 0.0
        %1539 = vmatpush1.msra.mxu0 0.0
        %1540 = vmatprep.subr.mxu0 0.0
        %1541 = vmatpush1.msra.mxu0 0.0
        %1542 = vmatprep.subr.mxu0 0.0
        %1543 = vmatpush1.msra.mxu0 0.0
        %1544 = vmatprep.subr.mxu0 0.0
        %1545 = vmatpush1.msra.mxu0 0.0
        %1546 = vmatprep.mubr.f32.mxu0 0.0
        %1547 = vmatmul.mubr.f32.gmra.mrb[0].mxu0 %v1473
        %v1548 = vpop.f32.mrb[0].mxu0
        %v1549 = vadd.f32 %v1469, %v1548
        %v1550 = vpop.f32.mrb[0].mxu0
        %v1551 = vadd.f32 %v1469, %v1550
        %1552 = vdwg.mxu0
        %v1553 = vmax.f32 %v1549, 0.0
        %v1554 = vmax.f32 %v1551, 0.0
        %v1555 = vld [vmem:[%s5] sm:$0x3]
        %v1556 = vld [vmem:[%s10] sm:$0x3]
        %1558 = vset.pattern.permute.xlu0 0
        %1559 = vperm.xlu0 %1558, %v1556
        %v1560 = vpop.permute.xlu0 %1559
        %v1563 = vsel %vm1471, %v1555, 0
        %v1566 = vsel %vm1475, %v1553, 0
        %v1569 = vsel %vm1475, %v1554, 0
        %1571 = vmatprep.subr.mxu0 %v1569
        %1572 = vmatpush1.msra.mxu0 %v1566
        %1573 = vmatprep.subr.mxu0 0.0
        %1574 = vmatpush1.msra.mxu0 0.0
        %1575 = vmatprep.subr.mxu0 0.0
        %1576 = vmatpush1.msra.mxu0 0.0
        %1577 = vmatprep.subr.mxu0 0.0
        %1578 = vmatpush1.msra.mxu0 0.0
        %1579 = vmatprep.subr.mxu0 0.0
        %1580 = vmatpush1.msra.mxu0 0.0
        %1581 = vmatprep.subr.mxu0 0.0
        %1582 = vmatpush1.msra.mxu0 0.0
        %1583 = vmatprep.subr.mxu0 0.0
        %1584 = vmatpush1.msra.mxu0 0.0
        %1585 = vmatprep.subr.mxu0 0.0
        %1586 = vmatpush1.msra.mxu0 0.0
        %1587 = vmatprep.subr.mxu0 0.0
        %1588 = vmatpush1.msra.mxu0 0.0
        %1589 = vmatprep.subr.mxu0 0.0
        %1590 = vmatpush1.msra.mxu0 0.0
        %1591 = vmatprep.subr.mxu0 0.0
        %1592 = vmatpush1.msra.mxu0 0.0
        %1593 = vmatprep.subr.mxu0 0.0
        %1594 = vmatpush1.msra.mxu0 0.0
        %1595 = vmatprep.subr.mxu0 0.0
        %1596 = vmatpush1.msra.mxu0 0.0
        %1597 = vmatprep.subr.mxu0 0.0
        %1598 = vmatpush1.msra.mxu0 0.0
        %1599 = vmatprep.subr.mxu0 0.0
        %1600 = vmatpush1.msra.mxu0 0.0
        %1601 = vmatprep.subr.mxu0 0.0
        %1602 = vmatpush1.msra.mxu0 0.0
        %1603 = vmatprep.subr.mxu0 0.0
        %1604 = vmatpush1.msra.mxu0 0.0
        %1605 = vmatprep.subr.mxu0 0.0
        %1606 = vmatpush1.msra.mxu0 0.0
        %1607 = vmatprep.subr.mxu0 0.0
        %1608 = vmatpush1.msra.mxu0 0.0
        %1609 = vmatprep.subr.mxu0 0.0
        %1610 = vmatpush1.msra.mxu0 0.0
        %1611 = vmatprep.subr.mxu0 0.0
        %1612 = vmatpush1.msra.mxu0 0.0
        %1613 = vmatprep.subr.mxu0 0.0
        %1614 = vmatpush1.msra.mxu0 0.0
        %1615 = vmatprep.subr.mxu0 0.0
        %1616 = vmatpush1.msra.mxu0 0.0
        %1617 = vmatprep.subr.mxu0 0.0
        %1618 = vmatpush1.msra.mxu0 0.0
        %1619 = vmatprep.subr.mxu0 0.0
        %1620 = vmatpush1.msra.mxu0 0.0
        %1621 = vmatprep.subr.mxu0 0.0
        %1622 = vmatpush1.msra.mxu0 0.0
        %1623 = vmatprep.subr.mxu0 0.0
        %1624 = vmatpush1.msra.mxu0 0.0
        %1625 = vmatprep.subr.mxu0 0.0
        %1626 = vmatpush1.msra.mxu0 0.0
        %1627 = vmatprep.subr.mxu0 0.0
        %1628 = vmatpush1.msra.mxu0 0.0
        %1629 = vmatprep.subr.mxu0 0.0
        %1630 = vmatpush1.msra.mxu0 0.0
        %1631 = vmatprep.subr.mxu0 0.0
        %1632 = vmatpush1.msra.mxu0 0.0
        %1633 = vmatprep.subr.mxu0 0.0
        %1634 = vmatpush1.msra.mxu0 0.0
        %1635 = vmatprep.mubr.f32.mxu0 0.0
        %1636 = vmatmul.mubr.f32.gmra.mrb[0].mxu0 %v1563
        %v1637 = vpop.f32.mrb[0].mxu0
        %v1638 = vadd.f32 %v1560, %v1637
        %v1639 = vpop.f32.mrb[0].mxu0
        %v1640 = vadd.f32 %v1560, %v1639
        %1641 = vdwg.mxu0
        %v1642 = vmax.f32 %v1638, 0.0
        %v1643 = vmax.f32 %v1640, 0.0
        %v1646 = vcombine.low %v1642, %v1643
        %v1648 = vunpack.c.l.s4 1983009808
        %v1649 = vunpack.c.0.s8 %v1648
        %v1650 = vlaneseq
        %v1651 = vshrl.u32 %v1650, 7
        %v1652 = vsub.s32 %v1649, %v1651
        %v1653 = vrot.slane %v1646, %v1652
        %1655 = vst [vmem:[%s849] sm:$0xf] %v1653
        %s1656 = sand.u32 %s269, 1
        %s1657 = scalar_lea.sflag [#allocation4], %s1656
        %s1658 = sand.u32 %s269, 1
        %s1659 = smul.addr %s1658, 4
        %s1660 = scalar_lea.vmem [#allocation3], %s1659
        // Predicated region
        $region131: #{net_forward.1} parent=125 // pred_check
          %p1661 = pneg %p279
        $region132: #{net_forward.1} parent=125 // pred_check_branch
          %1663 = sbr.rel (%p1661) target = $region134
        $region133: #{net_forward.1} parent=125 // pred_region
          %s1664 = smul.u32 2, %s25
          %s1665 = ssub.s32 3, %s1664
          %p1666 = scmp.lt.s32.totalorder %s1665, 2
          %s1667 = scalar_select %p1666, %s1665, 2
          %s1668 = smul.u32 32, %s1667
          %s1670 = ssub.s32 64, %s1668
          %1671 = vsyncadd %s1657, %s1670
          %p1672 = scmp.ne.s32.totalorder 0, %s1668
          %s1673 = smul.addr %s1664, 32
          %s1674 = scalar_lea.hbm %s11, %s1673
          %s1675 = smul.u32 %s1667, 2
          %s1676 = sshll.u32 %s1675, 4
          %s1677 = sshll.u32 %s1660, 4
          %s1678 = int_to_ptr.vmem [resolvable:$true] %s1677
          %1680 = dma.vmem_to_hbm [thread:$0]  (%p1672), %s1678, %s1676, %s1674, %s1657
        $region134: #{net_forward.1} parent=125 // pred_fallthru
          _
      $region126: #{net_forward.1} parent=5 // pred_fallthru
        _
      %p1681 = scmp.le.s32.totalorder 2, %s20
      // Predicated region
      $region135: #{net_forward.1} parent=5 // pred_check
        %p1682 = pneg %p1681
      $region136: #{net_forward.1} parent=5 // pred_check_branch
        %1684 = sbr.rel (%p1682) target = $region138
      $region137: #{net_forward.1} parent=5 // pred_region
        %s1685 = ssub.s32 %s20, 2
        // Predicated region
        $region139: #{net_forward.1} parent=137 // pred_check
          %p1686 = pneg %p285
        $region140: #{net_forward.1} parent=137 // pred_check_branch
          %1688 = sbr.rel (%p1686) target = $region142
        $region141: #{net_forward.1} parent=137 // pred_region
          %s1689 = sand.u32 %s270, 1
          %s1690 = scalar_lea.sflag [#allocation4], %s1689
          %s1691 = sand.u32 %s270, 1
          %s1692 = smul.addr %s1691, 4
          %s1693 = scalar_lea.vmem [#allocation3], %s1692
          %1694 = dma.done %s1690, 64
        $region142: #{net_forward.1} parent=137 // pred_fallthru
          _
      $region138: #{net_forward.1} parent=5 // pred_fallthru
        _
    $region6: #{net_forward.1} parent=1 // loop_footer
      %s24 = sadd.s32 1, %s20
    $region7: #{net_forward.1} parent=1 // loop_footer_branch
      %19 = sbr.rel target = $region3
    $region8: #{net_forward.1} parent=1 // loop_exit
      _
    %1695 = vsyncpa [#allocation4], 1
    %s1696 = scalar_lea.sflag [#allocation4], 1
    %1697 = vsyncpa %s1696, 1

</llo_original>
